<compile_context>
chip_gen: v6e
topology: v6e:2x2x1
jax: 0.10.0
libtpu: 0.0.40
codegen_flags: <defaults>
</compile_context>

<pallas_src>
import math
from functools import lru_cache, partial

import jax
import jax.numpy as jnp
from jax import lax
from jax.experimental import pallas as pl
from jax.experimental.pallas import tpu as pltpu


def _round_up(x, m):
    return ((x + m - 1) // m) * m


def _largest_divisor_leq(n, cap):
    for d in range(min(cap, n), 0, -1):
        if n % d == 0:
            return d
    return 1


def _pick_tile(dim, cap):
    """Tile along a lane-facing (last) dim; avoid padding whenever possible.

    Returns (tile, padded_dim): the full extent when `dim` is small, else the
    largest 128-multiple divisor of `dim` that fits `cap`, else a padded
    128-multiple tile (only for large unaligned dims)."""
    if dim <= cap:
        return dim, dim
    t = (cap // 128) * 128
    while t >= 128:
        if dim % t == 0:
            return t, dim
        t -= 128
    t = (cap // 128) * 128
    return t, _round_up(dim, t)


@lru_cache(maxsize=None)
def _tpu_config():
    """Per-generation sizing: v5e/v6e have 128 MiB VMEM/core, v7x has 64 MiB."""
    vmem_bytes = None
    try:
        vmem_bytes = getattr(pltpu.get_tpu_info(), "vmem_capacity_bytes", None)
    except Exception:  # interpret mode / lookup failure -> conservative config
        vmem_bytes = None
    if vmem_bytes is not None and vmem_bytes >= 96 * 1024 * 1024:
        # v5e / v6e (128 MiB VMEM): larger tiles, higher VMEM limit.
        return dict(vmem_limit=100 * 1024 * 1024,
                    lin_tm=512, lin_tn=512, lin_tk=1024,
                    attn_hb=8, attn_bq=512, attn_bkv=256)
    # v7x (64 MiB per TensorCore) or unknown: keep score/p footprint small.
    return dict(vmem_limit=52 * 1024 * 1024,
                lin_tm=256, lin_tn=256, lin_tk=512,
                attn_hb=4, attn_bq=256, attn_bkv=256)


# ----------------------------------------------------------------------------
# Kernel 1: tiled linear layer  y = x @ W + b
# grid = (M tiles, N tiles, K tiles); K innermost "arbitrary" reduction axis.
# The f32 output block itself is the accumulator (bias-initialized at k == 0);
# MXU operands are bf16, accumulation is f32.
# ----------------------------------------------------------------------------
def linear_kernel(x_ref, w_ref, b_ref, o_ref):
    @pl.when(pl.program_id(2) == 0)
    def _init():
        o_ref[...] = jnp.broadcast_to(b_ref[...], o_ref.shape)

    o_ref[...] += jnp.dot(
        x_ref[...].astype(jnp.bfloat16),
        w_ref[...].astype(jnp.bfloat16),
        preferred_element_type=jnp.float32,
    )


def pallas_linear(x, w, b, *, tm=None, tn=None, tk=None):
    """x: (M, K) f32, w: (K, N) f32, b: (N,) f32  ->  x @ w + b, (M, N) f32."""
    cfg = _tpu_config()
    tm = cfg["lin_tm"] if tm is None else tm
    tn = cfg["lin_tn"] if tn is None else tn
    tk = cfg["lin_tk"] if tk is None else tk

    M, K = x.shape
    Kw, N = w.shape
    assert K == Kw and b.shape == (N,)
    assert x.dtype == jnp.float32, "f32 activations expected (bf16 cast is in-kernel)"

    tk, Kp = _pick_tile(K, tk)
    tn, Np = _pick_tile(N, tn)
    tm = min(tm, _round_up(M, 8))
    Mp = _round_up(M, tm)

    # Pad only when actually needed (typical d_model needs no weight padding).
    xp = jnp.pad(x, ((0, Mp - M), (0, Kp - K))) if (Mp, Kp) != (M, K) else x
    wp = jnp.pad(w, ((0, Kp - K), (0, Np - N))) if (Kp, Np) != (K, N) else w
    bp = jnp.pad(b, (0, Np - N)) if Np != N else b

    grid = (Mp // tm, Np // tn, Kp // tk)
    out = pl.pallas_call(
        linear_kernel,
        out_shape=jax.ShapeDtypeStruct((Mp, Np), jnp.float32),
        grid_spec=pltpu.PrefetchScalarGridSpec(
            num_scalar_prefetch=0,
            grid=grid,
            in_specs=[
                pl.BlockSpec((tm, tk), lambda i, j, k: (i, k)),
                pl.BlockSpec((tk, tn), lambda i, j, k: (k, j)),
                pl.BlockSpec((1, tn), lambda i, j, k: (0, j)),
            ],
            out_specs=pl.BlockSpec((tm, tn), lambda i, j, k: (i, j)),
        ),
        compiler_params=pltpu.CompilerParams(
            dimension_semantics=("parallel", "parallel", "arbitrary"),
            vmem_limit_bytes=cfg["vmem_limit"],
        ),
        cost_estimate=pl.CostEstimate(
            flops=2 * Mp * Kp * Np,
            transcendentals=0,
            bytes_accessed=(Mp * Kp + Kp * Np * (Mp // tm) + Mp * Np) * 4,
        ),
    )(xp, wp, bp.reshape(1, Np))
    if (Mp, Np) != (M, N):
        out = out[:M, :N]
    return out


# ----------------------------------------------------------------------------
# Kernel 2: flash-style scaled dot-product attention.
# Blocks (heads_per_block, tile, depth); grid = (head_groups, q_tiles, kv_tiles)
# with online-softmax state (m, l, acc) in VMEM scratch across the innermost
# ("arbitrary") KV axis.
# ----------------------------------------------------------------------------
def flash_attention_kernel(
    q_ref, k_ref, v_ref, o_ref, m_ref, l_ref, acc_ref,
    *, scale, kv_len, block_kv, mask_kv,
):
    ki = pl.program_id(2)

    @pl.when(ki == 0)
    def _init():
        m_ref[...] = jnp.full_like(m_ref, -jnp.inf)
        l_ref[...] = jnp.zeros_like(l_ref)
        acc_ref[...] = jnp.zeros_like(acc_ref)

    # Fold 1/sqrt(depth) into Q (hb*tq*depth mults instead of hb*tq*tkv), then
    # hand bf16 operands to the MXU; scores accumulate in f32.
    q = (q_ref[...] * scale).astype(jnp.bfloat16)
    k = k_ref[...].astype(jnp.bfloat16)
    s = jnp.einsum("hqd,hkd->hqk", q, k, preferred_element_type=jnp.float32)

    if mask_kv:  # static flag: only traced when the KV axis was padded.
        # (1, 1, block_kv) iota broadcast in the compare.  The first KV tile is
        # never fully padded (column 0 is always valid), so m stays finite and
        # exp(m_prev - m_new) never produces NaN on later fully-padded tiles.
        kv_idx = lax.broadcasted_iota(jnp.int32, (1, 1, block_kv), 2) + ki * block_kv
        s = jnp.where(kv_idx < kv_len, s, -jnp.inf)

    m_prev = m_ref[...]
    m_new = jnp.maximum(m_prev, jnp.max(s, axis=-1, keepdims=True))
    alpha = jnp.exp(m_prev - m_new)
    p = jnp.exp(s - m_new)
    l_ref[...] = alpha * l_ref[...] + jnp.sum(p, axis=-1, keepdims=True)
    acc_ref[...] = alpha * acc_ref[...] + jnp.einsum(
        "hqk,hkd->hqd",
        p.astype(jnp.bfloat16),
        v_ref[...].astype(jnp.bfloat16),
        preferred_element_type=jnp.float32,
    )
    m_ref[...] = m_new

    @pl.when(ki == pl.num_programs(2) - 1)
    def _finalize():
        inv_l = pl.reciprocal(l_ref[...], approx=True)
        o_ref[...] = (acc_ref[...] * inv_l).astype(o_ref.dtype)


def pallas_flash_attention(q, k, v, *, block_q=None, block_kv=None,
                           heads_per_block=None):
    """q, k, v: (BH, S, depth) -> softmax(q k^T / sqrt(depth)) @ v."""
    cfg = _tpu_config()
    block_q = cfg["attn_bq"] if block_q is None else block_q
    block_kv = cfg["attn_bkv"] if block_kv is None else block_kv
    heads_per_block = cfg["attn_hb"] if heads_per_block is None else heads_per_block

    BH, S, depth = q.shape
    scale = 1.0 / math.sqrt(depth)

    # Decoupled Q / KV tiles (K/V HBM re-reads scale as S / block_q); keep
    # block_q a multiple of block_kv so a single padded length serves both.
    block_kv = min(block_kv, _round_up(S, 8))
    block_q = min(block_q, _round_up(S, 8))
    if block_q <= block_kv:
        block_q = block_kv
    else:
        block_q = (block_q // block_kv) * block_kv
    Sp = _round_up(S, block_q)
    mask_kv = Sp != S

    hb = _largest_divisor_leq(BH, heads_per_block)
    # Megacore guard: keep at least one "parallel" grid axis with extent >= 2.
    if hb > 1 and (BH // hb) < 2 and (Sp // block_q) < 2:
        hb = _largest_divisor_leq(BH, max(1, hb // 2))

    if mask_kv:
        pad = ((0, 0), (0, Sp - S), (0, 0))
        q, k, v = jnp.pad(q, pad), jnp.pad(k, pad), jnp.pad(v, pad)

    grid = (BH // hb, Sp // block_q, Sp // block_kv)
    q_spec = pl.BlockSpec((hb, block_q, depth), lambda g, qi, ki: (g, qi, 0))
    kv_spec = pl.BlockSpec((hb, block_kv, depth), lambda g, qi, ki: (g, ki, 0))

    out = pl.pallas_call(
        partial(flash_attention_kernel, scale=scale, kv_len=S,
                block_kv=block_kv, mask_kv=mask_kv),
        out_shape=jax.ShapeDtypeStruct((BH, Sp, depth), q.dtype),
        grid_spec=pltpu.PrefetchScalarGridSpec(
            num_scalar_prefetch=0,
            grid=grid,
            in_specs=[q_spec, kv_spec, kv_spec],
            out_specs=pl.BlockSpec((hb, block_q, depth),
                                   lambda g, qi, ki: (g, qi, 0)),
            scratch_shapes=[
                pltpu.VMEM((hb, block_q, 1), jnp.float32),      # running max
                pltpu.VMEM((hb, block_q, 1), jnp.float32),      # running denom
                pltpu.VMEM((hb, block_q, depth), jnp.float32),  # running numerator
            ],
        ),
        compiler_params=pltpu.CompilerParams(
            dimension_semantics=("parallel", "parallel", "arbitrary"),
            vmem_limit_bytes=cfg["vmem_limit"],
        ),
        cost_estimate=pl.CostEstimate(
            flops=4 * BH * Sp * Sp * depth,
            transcendentals=BH * Sp * Sp,
            bytes_accessed=(2 * BH * Sp * depth                       # q + out
                            + 2 * BH * Sp * depth * (Sp // block_q))  # k,v re-reads
                           * q.dtype.itemsize,
        ),
    )(q, k, v)
    if mask_kv:
        out = out[:, :S, :]
    return out


# ----------------------------------------------------------------------------
# MultiHeadAttention forward (matches the PyTorch module semantics).
# ----------------------------------------------------------------------------
def multi_head_attention(params, v, k, q, *, num_heads):
    # v, k, q: (B, S, d_model)
    B, S, d_model = q.shape
    depth = d_model // num_heads

    # Projections (PyTorch nn.Linear: y = x @ W.T + b; W pre-transposed).
    def proj(x, w_t, b):
        y = pallas_linear(x.reshape(B * S, d_model), w_t, b)
        return y.reshape(B, S, d_model)

    q_p = proj(q, params["wq_wt"], params["wq_b"])
    k_p = proj(k, params["wk_wt"], params["wk_b"])
    v_p = proj(v, params["wv_wt"], params["wv_b"])

    # split_heads: (B, S, d_model) -> (B*H, S, depth)
    # TODO(synk): fold the split/merge head transposes into the attention
    # BlockSpecs over a (B, S, H, depth) layout (saves 4 HBM passes); a
    # head-sliced transpose-free block needs depth to satisfy the (8,128)
    # lane-tiling rule, which small depths violate, so kept in XLA glue here
    # for lowering robustness.
    def split_heads(x):
        return (
            x.reshape(B, S, num_heads, depth)
            .transpose(0, 2, 1, 3)
            .reshape(B * num_heads, S, depth)
        )

    attn = pallas_flash_attention(
        split_heads(q_p), split_heads(k_p), split_heads(v_p)
    )  # (B*H, S, depth)

    # merge heads back: (B*H, S, depth) -> (B, S, d_model)
    attn = (
        attn.reshape(B, num_heads, S, depth)
        .transpose(0, 2, 1, 3)
        .reshape(B, S, d_model)
    )

    out = pallas_linear(
        attn.reshape(B * S, d_model), params["dense_wt"], params["dense_b"]
    )
    return out.reshape(B, S, d_model)


# Pure-JAX f32 reference (the module semantics) for a sanity check.
def reference_mha(params, v, k, q, *, num_heads):
    B, S, d_model = q.shape
    depth = d_model // num_heads

    def proj(x, w_t, b):
        return x @ w_t + b

    def split(x):
        return x.reshape(B, S, num_heads, depth).transpose(0, 2, 1, 3)

    qh = split(proj(q, params["wq_wt"], params["wq_b"]))
    kh = split(proj(k, params["wk_wt"], params["wk_b"]))
    vh = split(proj(v, params["wv_wt"], params["wv_b"]))

    scores = jnp.einsum("bhqd,bhkd->bhqk", qh, kh) / math.sqrt(depth)
    w = jax.nn.softmax(scores, axis=-1)
    attn = jnp.einsum("bhqk,bhkd->bhqd", w, vh)
    attn = attn.transpose(0, 2, 1, 3).reshape(B, S, d_model)
    return attn @ params["dense_wt"] + params["dense_b"]


def init_params(key, d_model):
    # Deterministic synthetic init (PyTorch-Linear shaped: W is (out, in)).
    ks = jax.random.split(key, 8)
    scale = 1.0 / math.sqrt(d_model)

    def w(k):
        return jax.random.uniform(k, (d_model, d_model), jnp.float32, -scale, scale)

    def b(k):
        return jax.random.uniform(k, (d_model,), jnp.float32, -scale, scale)

    return {
        "wq_wt": w(ks[0]).T, "wq_b": b(ks[1]),
        "wk_wt": w(ks[2]).T, "wk_b": b(ks[3]),
        "wv_wt": w(ks[4]).T, "wv_b": b(ks[5]),
        "dense_wt": w(ks[6]).T, "dense_b": b(ks[7]),
    }


if __name__ == "__main__":
    B, S, d_model, num_heads = 2, 8, 32, 4

    key = jax.random.PRNGKey(0)
    kp, kq, kk, kv = jax.random.split(key, 4)
    params = init_params(kp, d_model)

    q = jax.random.normal(kq, (B, S, d_model), jnp.float32)
    k = jax.random.normal(kk, (B, S, d_model), jnp.float32)
    v = jax.random.normal(kv, (B, S, d_model), jnp.float32)

    mha = jax.jit(partial(multi_head_attention, num_heads=num_heads))
    out = jax.block_until_ready(mha(params, v, k, q))

    ref = reference_mha(params, v, k, q, num_heads=num_heads)
    assert out.shape == (B, S, d_model)
    # bf16 MXU operands (f32 accumulation) + approx reciprocal in the softmax
    # denominator -> ~1% relative error vs the pure-f32 reference.
    assert jnp.allclose(out, ref, rtol=3e-2, atol=3e-2), "mismatch vs reference"

    print("KERNEL_OK")
</pallas_src>

<mosaic_0001>
module attributes {stable_mosaic.version = 11 : i64} {
  func.func @linear_kernel(%arg0: i32, %arg1: i32, %arg2: i32, %arg3: memref<16x32xf32, #tpu.memory_space<vmem>>, %arg4: memref<32x32xf32, #tpu.memory_space<vmem>>, %arg5: memref<1x32xf32, #tpu.memory_space<vmem>>, %arg6: memref<16x32xf32, #tpu.memory_space<vmem>>) attributes {dimension_semantics = [#tpu.dimension_semantics<parallel>, #tpu.dimension_semantics<parallel>, #tpu.dimension_semantics<arbitrary>], iteration_bounds = array<i64: 1, 1, 1>, scalar_prefetch = 0 : i64, scratch_operands = 0 : i64, tpu.core_type = #tpu.core_type<tc>, window_params = [{transform_indices = @transform_0, window_bounds = array<i64: 16, 32>}, {transform_indices = @transform_1, window_bounds = array<i64: 32, 32>}, {transform_indices = @transform_2, window_bounds = array<i64: 1, 32>}, {transform_indices = @transform_3, window_bounds = array<i64: 16, 32>}]} {
    %c0_i32 = arith.constant 0 : i32
    %0 = arith.cmpi eq, %arg2, %c0_i32 : i32
    %1 = arith.extui %0 : i1 to i32
    %c0_i32_0 = arith.constant 0 : i32
    %2 = arith.cmpi ne, %1, %c0_i32_0 : i32
    scf.if %2 {
      %c0_8 = arith.constant 0 : index
      %c0_9 = arith.constant 0 : index
      %11 = vector.load %arg5[%c0_8, %c0_9] : memref<1x32xf32, #tpu.memory_space<vmem>>, vector<1x32xf32>
      %12 = vector.shape_cast %11 : vector<1x32xf32> to vector<1x32xf32>
      %13 = vector.broadcast %12 : vector<1x32xf32> to vector<16x32xf32>
      %c0_10 = arith.constant 0 : index
      %c0_11 = arith.constant 0 : index
      %14 = vector.load %arg6[%c0_10, %c0_11] : memref<16x32xf32, #tpu.memory_space<vmem>>, vector<16x32xf32>
      tpu.vector_store %arg6[%c0_10, %c0_11], %13 {strides = array<i32>} : memref<16x32xf32, #tpu.memory_space<vmem>>, vector<16x32xf32>,
    } else {
    }
    %c0 = arith.constant 0 : index
    %c0_1 = arith.constant 0 : index
    %3 = vector.load %arg6[%c0, %c0_1] : memref<16x32xf32, #tpu.memory_space<vmem>>, vector<16x32xf32>
    %c0_2 = arith.constant 0 : index
    %c0_3 = arith.constant 0 : index
    %4 = vector.load %arg3[%c0_2, %c0_3] : memref<16x32xf32, #tpu.memory_space<vmem>>, vector<16x32xf32>
    %5 = arith.truncf %4 : vector<16x32xf32> to vector<16x32xbf16>
    %c0_4 = arith.constant 0 : index
    %c0_5 = arith.constant 0 : index
    %6 = vector.load %arg4[%c0_4, %c0_5] : memref<32x32xf32, #tpu.memory_space<vmem>>, vector<32x32xf32>
    %7 = arith.truncf %6 : vector<32x32xf32> to vector<32x32xbf16>
    %cst = arith.constant dense<0.000000e+00> : vector<16x32xf32>
    %8 = tpu.matmul %5, %7, %cst {dimension_numbers = #tpu.dot_dimension_numbers<[1], [0], [0], [1], [0, 0, 1, 1], [], []>} : vector<16x32xbf16>, vector<32x32xbf16>, vector<16x32xf32> -> vector<16x32xf32>
    %9 = arith.addf %3, %8 : vector<16x32xf32>
    %c0_6 = arith.constant 0 : index
    %c0_7 = arith.constant 0 : index
    %10 = vector.load %arg6[%c0_6, %c0_7] : memref<16x32xf32, #tpu.memory_space<vmem>>, vector<16x32xf32>
    tpu.vector_store %arg6[%c0_6, %c0_7], %9 {strides = array<i32>} : memref<16x32xf32, #tpu.memory_space<vmem>>, vector<16x32xf32>,
    return
  }
  func.func @transform_0(%arg0: i32, %arg1: i32, %arg2: i32) -> (i32, i32) {
    %c0_i32 = arith.constant 0 : i32
    return %arg0, %arg2 : i32, i32
  }
  func.func @transform_1(%arg0: i32, %arg1: i32, %arg2: i32) -> (i32, i32) {
    %c0_i32 = arith.constant 0 : i32
    return %arg2, %arg1 : i32, i32
  }
  func.func @transform_2(%arg0: i32, %arg1: i32, %arg2: i32) -> (i32, i32) {
    %c0_i32 = arith.constant 0 : i32
    %c0_i32_0 = arith.constant 0 : i32
    return %c0_i32, %arg1 : i32, i32
  }
  func.func @transform_3(%arg0: i32, %arg1: i32, %arg2: i32) -> (i32, i32) {
    %c0_i32 = arith.constant 0 : i32
    return %arg0, %arg1 : i32, i32
  }
}

module attributes {stable_mosaic.version = 11 : i64} {
  func.func @linear_kernel(%arg0: i32, %arg1: i32, %arg2: i32, %arg3: memref<16x32xf32, #tpu.memory_space<vmem>>, %arg4: memref<32x32xf32, #tpu.memory_space<vmem>>, %arg5: memref<1x32xf32, #tpu.memory_space<vmem>>, %arg6: memref<16x32xf32, #tpu.memory_space<vmem>>) attributes {dimension_semantics = [#tpu.dimension_semantics<parallel>, #tpu.dimension_semantics<parallel>, #tpu.dimension_semantics<arbitrary>], iteration_bounds = array<i64: 1, 1, 1>, scalar_prefetch = 0 : i64, scratch_operands = 0 : i64, tpu.core_type = #tpu.core_type<tc>, window_params = [{transform_indices = @transform_0, window_bounds = array<i64: 16, 32>}, {transform_indices = @transform_1, window_bounds = array<i64: 32, 32>}, {transform_indices = @transform_2, window_bounds = array<i64: 1, 32>}, {transform_indices = @transform_3, window_bounds = array<i64: 16, 32>}]} {
    %c0_i32 = arith.constant 0 : i32
    %0 = arith.cmpi eq, %arg2, %c0_i32 : i32
    %1 = arith.extui %0 : i1 to i32
    %c0_i32_0 = arith.constant 0 : i32
    %2 = arith.cmpi ne, %1, %c0_i32_0 : i32
    scf.if %2 {
      %c0_8 = arith.constant 0 : index
      %c0_9 = arith.constant 0 : index
      %11 = vector.load %arg5[%c0_8, %c0_9] : memref<1x32xf32, #tpu.memory_space<vmem>>, vector<1x32xf32>
      %12 = vector.shape_cast %11 : vector<1x32xf32> to vector<1x32xf32>
      %13 = vector.broadcast %12 : vector<1x32xf32> to vector<16x32xf32>
      %c0_10 = arith.constant 0 : index
      %c0_11 = arith.constant 0 : index
      %14 = vector.load %arg6[%c0_10, %c0_11] : memref<16x32xf32, #tpu.memory_space<vmem>>, vector<16x32xf32>
      tpu.vector_store %arg6[%c0_10, %c0_11], %13 {strides = array<i32>} : memref<16x32xf32, #tpu.memory_space<vmem>>, vector<16x32xf32>,
    } else {
    }
    %c0 = arith.constant 0 : index
    %c0_1 = arith.constant 0 : index
    %3 = vector.load %arg6[%c0, %c0_1] : memref<16x32xf32, #tpu.memory_space<vmem>>, vector<16x32xf32>
    %c0_2 = arith.constant 0 : index
    %c0_3 = arith.constant 0 : index
    %4 = vector.load %arg3[%c0_2, %c0_3] : memref<16x32xf32, #tpu.memory_space<vmem>>, vector<16x32xf32>
    %5 = arith.truncf %4 : vector<16x32xf32> to vector<16x32xbf16>
    %c0_4 = arith.constant 0 : index
    %c0_5 = arith.constant 0 : index
    %6 = vector.load %arg4[%c0_4, %c0_5] : memref<32x32xf32, #tpu.memory_space<vmem>>, vector<32x32xf32>
    %7 = arith.truncf %6 : vector<32x32xf32> to vector<32x32xbf16>
    %cst = arith.constant dense<0.000000e+00> : vector<16x32xf32>
    %8 = tpu.matmul %5, %7, %cst {dimension_numbers = #tpu.dot_dimension_numbers<[1], [0], [0], [1], [0, 0, 1, 1], [], []>} : vector<16x32xbf16>, vector<32x32xbf16>, vector<16x32xf32> -> vector<16x32xf32>
    %9 = arith.addf %3, %8 : vector<16x32xf32>
    %c0_6 = arith.constant 0 : index
    %c0_7 = arith.constant 0 : index
    %10 = vector.load %arg6[%c0_6, %c0_7] : memref<16x32xf32, #tpu.memory_space<vmem>>, vector<16x32xf32>
    tpu.vector_store %arg6[%c0_6, %c0_7], %9 {strides = array<i32>} : memref<16x32xf32, #tpu.memory_space<vmem>>, vector<16x32xf32>,
    return
  }
  func.func @transform_0(%arg0: i32, %arg1: i32, %arg2: i32) -> (i32, i32) {
    %c0_i32 = arith.constant 0 : i32
    return %arg0, %arg2 : i32, i32
  }
  func.func @transform_1(%arg0: i32, %arg1: i32, %arg2: i32) -> (i32, i32) {
    %c0_i32 = arith.constant 0 : i32
    return %arg2, %arg1 : i32, i32
  }
  func.func @transform_2(%arg0: i32, %arg1: i32, %arg2: i32) -> (i32, i32) {
    %c0_i32 = arith.constant 0 : i32
    %c0_i32_0 = arith.constant 0 : i32
    return %c0_i32, %arg1 : i32, i32
  }
  func.func @transform_3(%arg0: i32, %arg1: i32, %arg2: i32) -> (i32, i32) {
    %c0_i32 = arith.constant 0 : i32
    return %arg0, %arg1 : i32, i32
  }
}

module attributes {stable_mosaic.version = 11 : i64} {
  func.func @flash_attention_kernel(%arg0: i32, %arg1: i32, %arg2: i32, %arg3: memref<4x8x8xf32, #tpu.memory_space<vmem>>, %arg4: memref<4x8x8xf32, #tpu.memory_space<vmem>>, %arg5: memref<4x8x8xf32, #tpu.memory_space<vmem>>, %arg6: memref<4x8x8xf32, #tpu.memory_space<vmem>>, %arg7: memref<4x8x1xf32, #tpu.memory_space<vmem>>, %arg8: memref<4x8x1xf32, #tpu.memory_space<vmem>>, %arg9: memref<4x8x8xf32, #tpu.memory_space<vmem>>) attributes {dimension_semantics = [#tpu.dimension_semantics<parallel>, #tpu.dimension_semantics<parallel>, #tpu.dimension_semantics<arbitrary>], iteration_bounds = array<i64: 2, 1, 1>, scalar_prefetch = 0 : i64, scratch_operands = 3 : i64, tpu.core_type = #tpu.core_type<tc>, window_params = [{transform_indices = @transform_0, window_bounds = array<i64: 4, 8, 8>}, {transform_indices = @transform_1, window_bounds = array<i64: 4, 8, 8>}, {transform_indices = @transform_2, window_bounds = array<i64: 4, 8, 8>}, {transform_indices = @transform_3, window_bounds = array<i64: 4, 8, 8>}]} {
    %c0_i32 = arith.constant 0 : i32
    %0 = arith.cmpi eq, %arg2, %c0_i32 : i32
    %1 = arith.extui %0 : i1 to i32
    %c0_i32_0 = arith.constant 0 : i32
    %2 = arith.cmpi ne, %1, %c0_i32_0 : i32
    scf.if %2 {
      %cst_33 = arith.constant 0xFF800000 : f32
      %38 = vector.broadcast %cst_33 : f32 to vector<4x8x1xf32>
      %c0_34 = arith.constant 0 : index
      %c0_35 = arith.constant 0 : index
      %c0_36 = arith.constant 0 : index
      %39 = vector.load %arg7[%c0_34, %c0_35, %c0_36] : memref<4x8x1xf32, #tpu.memory_space<vmem>>, vector<4x8x1xf32>
      tpu.vector_store %arg7[%c0_34, %c0_35, %c0_36], %38 {strides = array<i32>} : memref<4x8x1xf32, #tpu.memory_space<vmem>>, vector<4x8x1xf32>,
      %cst_37 = arith.constant 0.000000e+00 : f32
      %40 = vector.broadcast %cst_37 : f32 to vector<4x8x1xf32>
      %c0_38 = arith.constant 0 : index
      %c0_39 = arith.constant 0 : index
      %c0_40 = arith.constant 0 : index
      %41 = vector.load %arg8[%c0_38, %c0_39, %c0_40] : memref<4x8x1xf32, #tpu.memory_space<vmem>>, vector<4x8x1xf32>
      tpu.vector_store %arg8[%c0_38, %c0_39, %c0_40], %40 {strides = array<i32>} : memref<4x8x1xf32, #tpu.memory_space<vmem>>, vector<4x8x1xf32>,
      %cst_41 = arith.constant 0.000000e+00 : f32
      %42 = vector.broadcast %cst_41 : f32 to vector<4x8x8xf32>
      %c0_42 = arith.constant 0 : index
      %c0_43 = arith.constant 0 : index
      %c0_44 = arith.constant 0 : index
      %43 = vector.load %arg9[%c0_42, %c0_43, %c0_44] : memref<4x8x8xf32, #tpu.memory_space<vmem>>, vector<4x8x8xf32>
      tpu.vector_store %arg9[%c0_42, %c0_43, %c0_44], %42 {strides = array<i32>} : memref<4x8x8xf32, #tpu.memory_space<vmem>>, vector<4x8x8xf32>,
    } else {
    }
    %c0 = arith.constant 0 : index
    %c0_1 = arith.constant 0 : index
    %c0_2 = arith.constant 0 : index
    %3 = vector.load %arg3[%c0, %c0_1, %c0_2] : memref<4x8x8xf32, #tpu.memory_space<vmem>>, vector<4x8x8xf32>
    %cst = arith.constant 0.353553385 : f32
    %4 = vector.broadcast %cst : f32 to vector<4x8x8xf32>
    %5 = arith.mulf %3, %4 : vector<4x8x8xf32>
    %6 = arith.truncf %5 : vector<4x8x8xf32> to vector<4x8x8xbf16>
    %c0_3 = arith.constant 0 : index
    %c0_4 = arith.constant 0 : index
    %c0_5 = arith.constant 0 : index
    %7 = vector.load %arg4[%c0_3, %c0_4, %c0_5] : memref<4x8x8xf32, #tpu.memory_space<vmem>>, vector<4x8x8xf32>
    %8 = arith.truncf %7 : vector<4x8x8xf32> to vector<4x8x8xbf16>
    "tpu.trace_start"() <{level = 10 : i32, message = "hqd,hkd->hqk"}> : () -> ()
    %cst_6 = arith.constant dense<0.000000e+00> : vector<4x8x8xf32>
    %9 = tpu.matmul %6, %8, %cst_6 {dimension_numbers = #tpu.dot_dimension_numbers<[2], [2], [1], [1], [0, 0, 0, 1, 1, 1], [0], [0]>} : vector<4x8x8xbf16>, vector<4x8x8xbf16>, vector<4x8x8xf32> -> vector<4x8x8xf32>
    "tpu.trace_stop"() : () -> ()
    %c0_7 = arith.constant 0 : index
    %c0_8 = arith.constant 0 : index
    %c0_9 = arith.constant 0 : index
    %10 = vector.load %arg7[%c0_7, %c0_8, %c0_9] : memref<4x8x1xf32, #tpu.memory_space<vmem>>, vector<4x8x1xf32>
    %cst_10 = arith.constant dense<0xFF800000> : vector<4x8xf32>
    %11 = vector.multi_reduction <maximumf>, %9, %cst_10 [2] : vector<4x8x8xf32> to vector<4x8xf32>
    %12 = vector.shape_cast %11 : vector<4x8xf32> to vector<4x8x1xf32>
    %13 = arith.maximumf %10, %12 : vector<4x8x1xf32>
    %14 = arith.subf %10, %13 : vector<4x8x1xf32>
    %15 = math.exp %14 : vector<4x8x1xf32>
    %16 = vector.broadcast %13 : vector<4x8x1xf32> to vector<4x8x8xf32>
    %17 = arith.subf %9, %16 : vector<4x8x8xf32>
    %18 = math.exp %17 : vector<4x8x8xf32>
    %c0_11 = arith.constant 0 : index
    %c0_12 = arith.constant 0 : index
    %c0_13 = arith.constant 0 : index
    %19 = vector.load %arg8[%c0_11, %c0_12, %c0_13] : memref<4x8x1xf32, #tpu.memory_space<vmem>>, vector<4x8x1xf32>
    %20 = arith.mulf %15, %19 : vector<4x8x1xf32>
    %cst_14 = arith.constant dense<0.000000e+00> : vector<4x8xf32>
    %21 = vector.multi_reduction <add>, %18, %cst_14 [2] : vector<4x8x8xf32> to vector<4x8xf32>
    %22 = vector.shape_cast %21 : vector<4x8xf32> to vector<4x8x1xf32>
    %23 = arith.addf %20, %22 : vector<4x8x1xf32>
    %c0_15 = arith.constant 0 : index
    %c0_16 = arith.constant 0 : index
    %c0_17 = arith.constant 0 : index
    %24 = vector.load %arg8[%c0_15, %c0_16, %c0_17] : memref<4x8x1xf32, #tpu.memory_space<vmem>>, vector<4x8x1xf32>
    tpu.vector_store %arg8[%c0_15, %c0_16, %c0_17], %23 {strides = array<i32>} : memref<4x8x1xf32, #tpu.memory_space<vmem>>, vector<4x8x1xf32>,
    %c0_18 = arith.constant 0 : index
    %c0_19 = arith.constant 0 : index
    %c0_20 = arith.constant 0 : index
    %25 = vector.load %arg9[%c0_18, %c0_19, %c0_20] : memref<4x8x8xf32, #tpu.memory_space<vmem>>, vector<4x8x8xf32>
    %26 = vector.broadcast %15 : vector<4x8x1xf32> to vector<4x8x8xf32>
    %27 = arith.mulf %26, %25 : vector<4x8x8xf32>
    %28 = arith.truncf %18 : vector<4x8x8xf32> to vector<4x8x8xbf16>
    %c0_21 = arith.constant 0 : index
    %c0_22 = arith.constant 0 : index
    %c0_23 = arith.constant 0 : index
    %29 = vector.load %arg5[%c0_21, %c0_22, %c0_23] : memref<4x8x8xf32, #tpu.memory_space<vmem>>, vector<4x8x8xf32>
    %30 = arith.truncf %29 : vector<4x8x8xf32> to vector<4x8x8xbf16>
    "tpu.trace_start"() <{level = 10 : i32, message = "hqk,hkd->hqd"}> : () -> ()
    %cst_24 = arith.constant dense<0.000000e+00> : vector<4x8x8xf32>
    %31 = tpu.matmul %28, %30, %cst_24 {dimension_numbers = #tpu.dot_dimension_numbers<[2], [1], [1], [2], [0, 0, 0, 1, 1, 2], [0], [0]>} : vector<4x8x8xbf16>, vector<4x8x8xbf16>, vector<4x8x8xf32> -> vector<4x8x8xf32>
    "tpu.trace_stop"() : () -> ()
    %32 = arith.addf %27, %31 : vector<4x8x8xf32>
    %c0_25 = arith.constant 0 : index
    %c0_26 = arith.constant 0 : index
    %c0_27 = arith.constant 0 : index
    %33 = vector.load %arg9[%c0_25, %c0_26, %c0_27] : memref<4x8x8xf32, #tpu.memory_space<vmem>>, vector<4x8x8xf32>
    tpu.vector_store %arg9[%c0_25, %c0_26, %c0_27], %32 {strides = array<i32>} : memref<4x8x8xf32, #tpu.memory_space<vmem>>, vector<4x8x8xf32>,
    %c0_28 = arith.constant 0 : index
    %c0_29 = arith.constant 0 : index
    %c0_30 = arith.constant 0 : index
    %34 = vector.load %arg7[%c0_28, %c0_29, %c0_30] : memref<4x8x1xf32, #tpu.memory_space<vmem>>, vector<4x8x1xf32>
    tpu.vector_store %arg7[%c0_28, %c0_29, %c0_30], %13 {strides = array<i32>} : memref<4x8x1xf32, #tpu.memory_space<vmem>>, vector<4x8x1xf32>,
    %c0_i32_31 = arith.constant 0 : i32
    %35 = arith.cmpi eq, %arg2, %c0_i32_31 : i32
    %36 = arith.extui %35 : i1 to i32
    %c0_i32_32 = arith.constant 0 : i32
    %37 = arith.cmpi ne, %36, %c0_i32_32 : i32
    scf.if %37 {
      %c0_33 = arith.constant 0 : index
      %c0_34 = arith.constant 0 : index
      %c0_35 = arith.constant 0 : index
      %38 = vector.load %arg8[%c0_33, %c0_34, %c0_35] : memref<4x8x1xf32, #tpu.memory_space<vmem>>, vector<4x8x1xf32>
      %39 = tpu.reciprocal %38 {approx = true} : vector<4x8x1xf32> -> vector<4x8x1xf32>
      %c0_36 = arith.constant 0 : index
      %c0_37 = arith.constant 0 : index
      %c0_38 = arith.constant 0 : index
      %40 = vector.load %arg9[%c0_36, %c0_37, %c0_38] : memref<4x8x8xf32, #tpu.memory_space<vmem>>, vector<4x8x8xf32>
      %41 = vector.broadcast %39 : vector<4x8x1xf32> to vector<4x8x8xf32>
      %42 = arith.mulf %40, %41 : vector<4x8x8xf32>
      %c0_39 = arith.constant 0 : index
      %c0_40 = arith.constant 0 : index
      %c0_41 = arith.constant 0 : index
      %43 = vector.load %arg6[%c0_39, %c0_40, %c0_41] : memref<4x8x8xf32, #tpu.memory_space<vmem>>, vector<4x8x8xf32>
      tpu.vector_store %arg6[%c0_39, %c0_40, %c0_41], %42 {strides = array<i32>} : memref<4x8x8xf32, #tpu.memory_space<vmem>>, vector<4x8x8xf32>,
    } else {
    }
    return
  }
  func.func @transform_0(%arg0: i32, %arg1: i32, %arg2: i32) -> (i32, i32, i32) {
    %c0_i32 = arith.constant 0 : i32
    %c0_i32_0 = arith.constant 0 : i32
    return %arg0, %arg1, %c0_i32 : i32, i32, i32
  }
  func.func @transform_1(%arg0: i32, %arg1: i32, %arg2: i32) -> (i32, i32, i32) {
    %c0_i32 = arith.constant 0 : i32
    %c0_i32_0 = arith.constant 0 : i32
    return %arg0, %arg2, %c0_i32 : i32, i32, i32
  }
  func.func @transform_2(%arg0: i32, %arg1: i32, %arg2: i32) -> (i32, i32, i32) {
    %c0_i32 = arith.constant 0 : i32
    %c0_i32_0 = arith.constant 0 : i32
    return %arg0, %arg2, %c0_i32 : i32, i32, i32
  }
  func.func @transform_3(%arg0: i32, %arg1: i32, %arg2: i32) -> (i32, i32, i32) {
    %c0_i32 = arith.constant 0 : i32
    %c0_i32_0 = arith.constant 0 : i32
    return %arg0, %arg1, %c0_i32 : i32, i32, i32
  }
}

module attributes {stable_mosaic.version = 11 : i64} {
  func.func @linear_kernel(%arg0: i32, %arg1: i32, %arg2: i32, %arg3: memref<16x32xf32, #tpu.memory_space<vmem>>, %arg4: memref<32x32xf32, #tpu.memory_space<vmem>>, %arg5: memref<1x32xf32, #tpu.memory_space<vmem>>, %arg6: memref<16x32xf32, #tpu.memory_space<vmem>>) attributes {dimension_semantics = [#tpu.dimension_semantics<parallel>, #tpu.dimension_semantics<parallel>, #tpu.dimension_semantics<arbitrary>], iteration_bounds = array<i64: 1, 1, 1>, scalar_prefetch = 0 : i64, scratch_operands = 0 : i64, tpu.core_type = #tpu.core_type<tc>, window_params = [{transform_indices = @transform_0, window_bounds = array<i64: 16, 32>}, {transform_indices = @transform_1, window_bounds = array<i64: 32, 32>}, {transform_indices = @transform_2, window_bounds = array<i64: 1, 32>}, {transform_indices = @transform_3, window_bounds = array<i64: 16, 32>}]} {
    %c0_i32 = arith.constant 0 : i32
    %0 = arith.cmpi eq, %arg2, %c0_i32 : i32
    %1 = arith.extui %0 : i1 to i32
    %c0_i32_0 = arith.constant 0 : i32
    %2 = arith.cmpi ne, %1, %c0_i32_0 : i32
    scf.if %2 {
      %c0_8 = arith.constant 0 : index
      %c0_9 = arith.constant 0 : index
      %11 = vector.load %arg5[%c0_8, %c0_9] : memref<1x32xf32, #tpu.memory_space<vmem>>, vector<1x32xf32>
      %12 = vector.shape_cast %11 : vector<1x32xf32> to vector<1x32xf32>
      %13 = vector.broadcast %12 : vector<1x32xf32> to vector<16x32xf32>
      %c0_10 = arith.constant 0 : index
      %c0_11 = arith.constant 0 : index
      %14 = vector.load %arg6[%c0_10, %c0_11] : memref<16x32xf32, #tpu.memory_space<vmem>>, vector<16x32xf32>
      tpu.vector_store %arg6[%c0_10, %c0_11], %13 {strides = array<i32>} : memref<16x32xf32, #tpu.memory_space<vmem>>, vector<16x32xf32>,
    } else {
    }
    %c0 = arith.constant 0 : index
    %c0_1 = arith.constant 0 : index
    %3 = vector.load %arg6[%c0, %c0_1] : memref<16x32xf32, #tpu.memory_space<vmem>>, vector<16x32xf32>
    %c0_2 = arith.constant 0 : index
    %c0_3 = arith.constant 0 : index
    %4 = vector.load %arg3[%c0_2, %c0_3] : memref<16x32xf32, #tpu.memory_space<vmem>>, vector<16x32xf32>
    %5 = arith.truncf %4 : vector<16x32xf32> to vector<16x32xbf16>
    %c0_4 = arith.constant 0 : index
    %c0_5 = arith.constant 0 : index
    %6 = vector.load %arg4[%c0_4, %c0_5] : memref<32x32xf32, #tpu.memory_space<vmem>>, vector<32x32xf32>
    %7 = arith.truncf %6 : vector<32x32xf32> to vector<32x32xbf16>
    %cst = arith.constant dense<0.000000e+00> : vector<16x32xf32>
    %8 = tpu.matmul %5, %7, %cst {dimension_numbers = #tpu.dot_dimension_numbers<[1], [0], [0], [1], [0, 0, 1, 1], [], []>} : vector<16x32xbf16>, vector<32x32xbf16>, vector<16x32xf32> -> vector<16x32xf32>
    %9 = arith.addf %3, %8 : vector<16x32xf32>
    %c0_6 = arith.constant 0 : index
    %c0_7 = arith.constant 0 : index
    %10 = vector.load %arg6[%c0_6, %c0_7] : memref<16x32xf32, #tpu.memory_space<vmem>>, vector<16x32xf32>
    tpu.vector_store %arg6[%c0_6, %c0_7], %9 {strides = array<i32>} : memref<16x32xf32, #tpu.memory_space<vmem>>, vector<16x32xf32>,
    return
  }
  func.func @transform_0(%arg0: i32, %arg1: i32, %arg2: i32) -> (i32, i32) {
    %c0_i32 = arith.constant 0 : i32
    return %arg0, %arg2 : i32, i32
  }
  func.func @transform_1(%arg0: i32, %arg1: i32, %arg2: i32) -> (i32, i32) {
    %c0_i32 = arith.constant 0 : i32
    return %arg2, %arg1 : i32, i32
  }
  func.func @transform_2(%arg0: i32, %arg1: i32, %arg2: i32) -> (i32, i32) {
    %c0_i32 = arith.constant 0 : i32
    %c0_i32_0 = arith.constant 0 : i32
    return %c0_i32, %arg1 : i32, i32
  }
  func.func @transform_3(%arg0: i32, %arg1: i32, %arg2: i32) -> (i32, i32) {
    %c0_i32 = arith.constant 0 : i32
    return %arg0, %arg1 : i32, i32
  }
}

</mosaic_0001>

<llo_original>
// kernel: multi_head_attention.6
$region0: #{multi_head_attention.6}
  #allocation0 [shape = 'u32[]', space=smem, size = 0x4, offset = 0x4, fixed_abs, tag = 'smem constant byte address 0x4 - core index']
  #allocation1 [shape = 'u32[144,128]{1,0:T(1,128)}', space=vmem, size = 0x12000, scoped, tag = 'internal scratch']
  %s0 = inlined_call_operand.vmem [shape: f32[16,32], index: 0, kind: input, shape index: {}]
  %s1 = inlined_call_operand.hbm [shape: f32[32,32], index: 1, kind: input, shape index: {}]
  %s2 = inlined_call_operand.vmem [shape: f32[1,32], index: 2, kind: input, shape index: {}]
  %s3 = inlined_call_operand.vmem [shape: f32[16,32], index: 3, kind: output, shape index: {}]
  %s4 = sld [smem:[#allocation0]]
  $region30: #{multi_head_attention.6} parent=0
    _
  %s6 = ssub.s32 1, %s4
  %s7 = scalar_select 0, %s6, %s4
  $region1: #{multi_head_attention.6} parent=0
    #allocation2 [shape = 'u8[16384]{0}', space=vmem, size = 0x4000, scoped, tag = 'input window, operand 1, single buffered']
    #allocation3 [shape = 's32[1]{0}', space=sflag, size = 0x4, scoped, tag = 'scoped memory for multi_head_attention.6']
    %8 = vsyncpa [#allocation3], 0
    // Predicated region
    $region2: #{multi_head_attention.6} parent=1 // pred_check
      _
    $region3: #{multi_head_attention.6} parent=1 // pred_check_branch
      %10 = sbr.rel (0) target = $region5
    $region4: #{multi_head_attention.6} parent=1 // pred_region
      _
    $region5: #{multi_head_attention.6} parent=1 // pred_fallthru
      _
    // Predicated region
    $region6: #{multi_head_attention.6} parent=1 // pred_check
      _
    $region7: #{multi_head_attention.6} parent=1 // pred_check_branch
      %12 = sbr.rel (0) target = $region9
    $region8: #{multi_head_attention.6} parent=1 // pred_region
      %s14 = ssub.s32 512, 512
      %15 = vsyncadd [#allocation3], %s14
      %s16 = sshll.u32 [#allocation2], 4
      %s17 = int_to_ptr.vmem [resolvable:$true] %s16
      %22 = dma.hbm_to_vmem [thread:$0]  %s1, 512, %s17, [#allocation3], 128, 128, 8
    $region9: #{multi_head_attention.6} parent=1 // pred_fallthru
      _
    // Predicated region
    $region10: #{multi_head_attention.6} parent=1 // pred_check
      _
    $region11: #{multi_head_attention.6} parent=1 // pred_check_branch
      %24 = sbr.rel (0) target = $region13
    $region12: #{multi_head_attention.6} parent=1 // pred_region
      _
    $region13: #{multi_head_attention.6} parent=1 // pred_fallthru
      _
    // Predicated region
    $region14: #{multi_head_attention.6} parent=1 // pred_check
      _
    $region15: #{multi_head_attention.6} parent=1 // pred_check_branch
      %26 = sbr.rel (0) target = $region17
    $region16: #{multi_head_attention.6} parent=1 // pred_region
      %27 = dma.done [#allocation3], 512
    $region17: #{multi_head_attention.6} parent=1 // pred_fallthru
      _
    %p29 = scmp.eq.s32.totalorder 0, 0
    // Predicated region
    $region18: #{multi_head_attention.6} parent=1 // pred_check
      %p30 = pneg %p29
    $region19: #{multi_head_attention.6} parent=1 // pred_check_branch
      %32 = sbr.rel (%p30) target = $region21
    $region20: #{multi_head_attention.6} parent=1 // pred_region
      %v33 = vld [vmem:[%s2] sm:$0x1]
      %v35 = vlaneseq
      %v36 = vshrl.u32 %v35, 7
      %v37 = vsub.s32 0, %v36
      %v38 = vrot.slane %v33, %v37
      %vm40 = vcmask 261120
      %41 = vst.msk [vmem:[%s3] sm:$0xff] %vm40, %v38
      %42 = vst.msk [vmem:[%s3 + $0x8] sm:$0xff] %vm40, %v38
    $region21: #{multi_head_attention.6} parent=1 // pred_fallthru
      _
    %v43 = vld [vmem:[%s3] sm:$0xff]
    %v44 = vld [vmem:[%s3 + $0x8] sm:$0xff]
    %v45 = vld [vmem:[%s0] sm:$0xff]
    %v46 = vld [vmem:[%s0 + $0x8] sm:$0xff]
    %v47 = vpack.c.bf16 %v46, %v45
    %v48 = vld [vmem:[#allocation2] sm:$0xff]
    %v49 = vld [vmem:[#allocation2 + $0x8] sm:$0xff]
    %v50 = vld [vmem:[#allocation2 + $0x10] sm:$0xff]
    %v51 = vld [vmem:[#allocation2 + $0x18] sm:$0xff]
    %v52 = vpack.c.bf16 %v49, %v48
    %v53 = vpack.c.bf16 %v51, %v50
    %vm54 = vcmask 261120
    %v56 = vsel %vm54, %v47, 0
    %58 = vmatprep.subr.bf16.mxu0 0
    %59 = vmatpush1.bf16.msra.mxu0 0
    %60 = vmatprep.subr.bf16.mxu0 0
    %61 = vmatpush1.bf16.msra.mxu0 0
    %62 = vmatprep.subr.bf16.mxu0 0
    %63 = vmatpush1.bf16.msra.mxu0 0
    %64 = vmatprep.subr.bf16.mxu0 0
    %65 = vmatpush1.bf16.msra.mxu0 0
    %66 = vmatprep.subr.bf16.mxu0 0
    %67 = vmatpush1.bf16.msra.mxu0 0
    %68 = vmatprep.subr.bf16.mxu0 0
    %69 = vmatpush1.bf16.msra.mxu0 0
    %70 = vmatprep.subr.bf16.mxu0 0
    %71 = vmatpush1.bf16.msra.mxu0 %v53
    %72 = vmatprep.subr.bf16.mxu0 0
    %73 = vmatpush1.bf16.msra.mxu0 %v52
    %74 = vmatprep.subr.bf16.mxu0 0
    %75 = vmatpush2.bf16.msra.mxu0 0
    %76 = vmatprep.subr.bf16.mxu0 0
    %77 = vmatpush2.bf16.msra.mxu0 0
    %78 = vmatprep.subr.bf16.mxu0 0
    %79 = vmatpush2.bf16.msra.mxu0 0
    %80 = vmatprep.subr.bf16.mxu0 0
    %81 = vmatpush2.bf16.msra.mxu0 0
    %82 = vmatprep.subr.bf16.mxu0 0
    %83 = vmatpush2.bf16.msra.mxu0 0
    %84 = vmatprep.subr.bf16.mxu0 0
    %85 = vmatpush2.bf16.msra.mxu0 0
    %86 = vmatprep.subr.bf16.mxu0 0
    %87 = vmatpush2.bf16.msra.mxu0 0
    %88 = vmatprep.subr.bf16.mxu0 0
    %89 = vmatpush2.bf16.msra.mxu0 0
    %90 = vmatprep.mubr.bf16.mxu0 0
    %91 = vmatmul.mubr.bf16.gmra.mxu0 %v56
    %v92 = vpop.f32.mrf.mxu0
    %v93 = vadd.f32 0.0, %v92
    %v94 = vpop.f32.mrf.mxu0
    %v95 = vpop.f32.mrf.mxu0
    %v96 = vadd.f32 0.0, %v95
    %v97 = vpop.f32.mrf.mxu0
    %98 = vdwg.mxu0
    %v99 = vadd.f32 %v43, %v93
    %v100 = vadd.f32 %v44, %v96
    %101 = vst.msk [vmem:[%s3] sm:$0xff] %vm54, %v99
    %102 = vst.msk [vmem:[%s3 + $0x8] sm:$0xff] %vm54, %v100
    // Predicated region
    $region22: #{multi_head_attention.6} parent=1 // pred_check
      _
    $region23: #{multi_head_attention.6} parent=1 // pred_check_branch
      %104 = sbr.rel (0) target = $region25
    $region24: #{multi_head_attention.6} parent=1 // pred_region
      _
    $region25: #{multi_head_attention.6} parent=1 // pred_fallthru
      _
    // Predicated region
    $region26: #{multi_head_attention.6} parent=1 // pred_check
      _
    $region27: #{multi_head_attention.6} parent=1 // pred_check_branch
      %106 = sbr.rel (0) target = $region29
    $region28: #{multi_head_attention.6} parent=1 // pred_region
      _
    $region29: #{multi_head_attention.6} parent=1 // pred_fallthru
      _
    %107 = vsyncpa [#allocation3], 1

// kernel: multi_head_attention.5
$region0: #{multi_head_attention.5}
  #allocation0 [shape = 'u32[]', space=smem, size = 0x4, offset = 0x4, fixed_abs, tag = 'smem constant byte address 0x4 - core index']
  #allocation1 [shape = 'u32[144,128]{1,0:T(1,128)}', space=vmem, size = 0x12000, scoped, tag = 'internal scratch']
  %s0 = inlined_call_operand.vmem [shape: f32[16,32], index: 0, kind: input, shape index: {}]
  %s1 = inlined_call_operand.vmem [shape: f32[32,32], index: 1, kind: input, shape index: {}]
  %s2 = inlined_call_operand.vmem [shape: f32[1,32], index: 2, kind: input, shape index: {}]
  %s3 = inlined_call_operand.vmem [shape: f32[16,32], index: 3, kind: output, shape index: {}]
  %s4 = sld [smem:[#allocation0]]
  $region26: #{multi_head_attention.5} parent=0
    _
  %s6 = ssub.s32 1, %s4
  %s7 = scalar_select 0, %s6, %s4
  // Predicated region
  $region2: #{multi_head_attention.5} parent=0 // pred_check
    _
  $region3: #{multi_head_attention.5} parent=0 // pred_check_branch
    %9 = sbr.rel (0) target = $region5
  $region4: #{multi_head_attention.5} parent=0 // pred_region
    _
  $region5: #{multi_head_attention.5} parent=0 // pred_fallthru
    _
  // Predicated region
  $region6: #{multi_head_attention.5} parent=0 // pred_check
    _
  $region7: #{multi_head_attention.5} parent=0 // pred_check_branch
    %11 = sbr.rel (0) target = $region9
  $region8: #{multi_head_attention.5} parent=0 // pred_region
    _
  $region9: #{multi_head_attention.5} parent=0 // pred_fallthru
    _
  // Predicated region
  $region10: #{multi_head_attention.5} parent=0 // pred_check
    _
  $region11: #{multi_head_attention.5} parent=0 // pred_check_branch
    %13 = sbr.rel (0) target = $region13
  $region12: #{multi_head_attention.5} parent=0 // pred_region
    _
  $region13: #{multi_head_attention.5} parent=0 // pred_fallthru
    _
  %p15 = scmp.eq.s32.totalorder 0, 0
  // Predicated region
  $region14: #{multi_head_attention.5} parent=0 // pred_check
    %p16 = pneg %p15
  $region15: #{multi_head_attention.5} parent=0 // pred_check_branch
    %18 = sbr.rel (%p16) target = $region17
  $region16: #{multi_head_attention.5} parent=0 // pred_region
    %v19 = vld [vmem:[%s2] sm:$0x1]
    %v21 = vlaneseq
    %v22 = vshrl.u32 %v21, 7
    %v23 = vsub.s32 0, %v22
    %v24 = vrot.slane %v19, %v23
    %vm26 = vcmask 261120
    %27 = vst.msk [vmem:[%s3] sm:$0xff] %vm26, %v24
    %28 = vst.msk [vmem:[%s3 + $0x8] sm:$0xff] %vm26, %v24
  $region17: #{multi_head_attention.5} parent=0 // pred_fallthru
    _
  %v29 = vld [vmem:[%s3] sm:$0xff]
  %v30 = vld [vmem:[%s3 + $0x8] sm:$0xff]
  %v31 = vld [vmem:[%s0] sm:$0xff]
  %v32 = vld [vmem:[%s0 + $0x8] sm:$0xff]
  %v33 = vpack.c.bf16 %v32, %v31
  %v34 = vld [vmem:[%s1] sm:$0xff]
  %v35 = vld [vmem:[%s1 + $0x8] sm:$0xff]
  %v36 = vld [vmem:[%s1 + $0x10] sm:$0xff]
  %v37 = vld [vmem:[%s1 + $0x18] sm:$0xff]
  %v38 = vpack.c.bf16 %v35, %v34
  %v39 = vpack.c.bf16 %v37, %v36
  %vm40 = vcmask 261120
  %v42 = vsel %vm40, %v33, 0
  %44 = vmatprep.subr.bf16.mxu0 0
  %45 = vmatpush1.bf16.msra.mxu0 0
  %46 = vmatprep.subr.bf16.mxu0 0
  %47 = vmatpush1.bf16.msra.mxu0 0
  %48 = vmatprep.subr.bf16.mxu0 0
  %49 = vmatpush1.bf16.msra.mxu0 0
  %50 = vmatprep.subr.bf16.mxu0 0
  %51 = vmatpush1.bf16.msra.mxu0 0
  %52 = vmatprep.subr.bf16.mxu0 0
  %53 = vmatpush1.bf16.msra.mxu0 0
  %54 = vmatprep.subr.bf16.mxu0 0
  %55 = vmatpush1.bf16.msra.mxu0 0
  %56 = vmatprep.subr.bf16.mxu0 0
  %57 = vmatpush1.bf16.msra.mxu0 %v39
  %58 = vmatprep.subr.bf16.mxu0 0
  %59 = vmatpush1.bf16.msra.mxu0 %v38
  %60 = vmatprep.subr.bf16.mxu0 0
  %61 = vmatpush2.bf16.msra.mxu0 0
  %62 = vmatprep.subr.bf16.mxu0 0
  %63 = vmatpush2.bf16.msra.mxu0 0
  %64 = vmatprep.subr.bf16.mxu0 0
  %65 = vmatpush2.bf16.msra.mxu0 0
  %66 = vmatprep.subr.bf16.mxu0 0
  %67 = vmatpush2.bf16.msra.mxu0 0
  %68 = vmatprep.subr.bf16.mxu0 0
  %69 = vmatpush2.bf16.msra.mxu0 0
  %70 = vmatprep.subr.bf16.mxu0 0
  %71 = vmatpush2.bf16.msra.mxu0 0
  %72 = vmatprep.subr.bf16.mxu0 0
  %73 = vmatpush2.bf16.msra.mxu0 0
  %74 = vmatprep.subr.bf16.mxu0 0
  %75 = vmatpush2.bf16.msra.mxu0 0
  %76 = vmatprep.mubr.bf16.mxu0 0
  %77 = vmatmul.mubr.bf16.gmra.mxu0 %v42
  %v78 = vpop.f32.mrf.mxu0
  %v79 = vadd.f32 0.0, %v78
  %v80 = vpop.f32.mrf.mxu0
  %v81 = vpop.f32.mrf.mxu0
  %v82 = vadd.f32 0.0, %v81
  %v83 = vpop.f32.mrf.mxu0
  %84 = vdwg.mxu0
  %v85 = vadd.f32 %v29, %v79
  %v86 = vadd.f32 %v30, %v82
  %87 = vst.msk [vmem:[%s3] sm:$0xff] %vm40, %v85
  %88 = vst.msk [vmem:[%s3 + $0x8] sm:$0xff] %vm40, %v86
  // Predicated region
  $region18: #{multi_head_attention.5} parent=0 // pred_check
    _
  $region19: #{multi_head_attention.5} parent=0 // pred_check_branch
    %90 = sbr.rel (0) target = $region21
  $region20: #{multi_head_attention.5} parent=0 // pred_region
    _
  $region21: #{multi_head_attention.5} parent=0 // pred_fallthru
    _
  // Predicated region
  $region22: #{multi_head_attention.5} parent=0 // pred_check
    _
  $region23: #{multi_head_attention.5} parent=0 // pred_check_branch
    %92 = sbr.rel (0) target = $region25
  $region24: #{multi_head_attention.5} parent=0 // pred_region
    _
  $region25: #{multi_head_attention.5} parent=0 // pred_fallthru
    _

// kernel: multi_head_attention.9
$region0: #{multi_head_attention.9}
  #allocation0 [shape = 'u32[]', space=smem, size = 0x4, offset = 0x4, fixed_abs, tag = 'smem constant byte address 0x4 - core index']
  #allocation1 [shape = 'u32[144,128]{1,0:T(1,128)}', space=vmem, size = 0x12000, scoped, tag = 'internal scratch']
  %s0 = inlined_call_operand.vmem [shape: f32[16,32], index: 0, kind: input, shape index: {}]
  %s1 = inlined_call_operand.vmem [shape: f32[32,32], index: 1, kind: input, shape index: {}]
  %s2 = inlined_call_operand.vmem [shape: f32[1,32], index: 2, kind: input, shape index: {}]
  %s3 = inlined_call_operand.hbm [shape: f32[16,32], index: 3, kind: output, shape index: {}]
  %s4 = sld [smem:[#allocation0]]
  $region26: #{multi_head_attention.9} parent=0
    _
  %s6 = ssub.s32 1, %s4
  %s7 = scalar_select 0, %s6, %s4
  $region1: #{multi_head_attention.9} parent=0
    #allocation2 [shape = 'u8[8192]{0}', space=vmem, size = 0x2000, scoped, tag = 'output window, operand 0, single buffered']
    #allocation3 [shape = 's32[1]{0}', space=sflag, size = 0x4, scoped, tag = 'scoped memory for multi_head_attention.9']
    %8 = vsyncpa [#allocation3], 0
    // Predicated region
    $region2: #{multi_head_attention.9} parent=1 // pred_check
      _
    $region3: #{multi_head_attention.9} parent=1 // pred_check_branch
      %10 = sbr.rel (0) target = $region5
    $region4: #{multi_head_attention.9} parent=1 // pred_region
      _
    $region5: #{multi_head_attention.9} parent=1 // pred_fallthru
      _
    // Predicated region
    $region6: #{multi_head_attention.9} parent=1 // pred_check
      _
    $region7: #{multi_head_attention.9} parent=1 // pred_check_branch
      %12 = sbr.rel (0) target = $region9
    $region8: #{multi_head_attention.9} parent=1 // pred_region
      _
    $region9: #{multi_head_attention.9} parent=1 // pred_fallthru
      _
    // Predicated region
    $region10: #{multi_head_attention.9} parent=1 // pred_check
      _
    $region11: #{multi_head_attention.9} parent=1 // pred_check_branch
      %14 = sbr.rel (0) target = $region13
    $region12: #{multi_head_attention.9} parent=1 // pred_region
      _
    $region13: #{multi_head_attention.9} parent=1 // pred_fallthru
      _
    %p16 = scmp.eq.s32.totalorder 0, 0
    // Predicated region
    $region14: #{multi_head_attention.9} parent=1 // pred_check
      %p17 = pneg %p16
    $region15: #{multi_head_attention.9} parent=1 // pred_check_branch
      %19 = sbr.rel (%p17) target = $region17
    $region16: #{multi_head_attention.9} parent=1 // pred_region
      %v20 = vld [vmem:[%s2] sm:$0x1]
      %v22 = vlaneseq
      %v23 = vshrl.u32 %v22, 7
      %v24 = vsub.s32 0, %v23
      %v25 = vrot.slane %v20, %v24
      %vm27 = vcmask 261120
      %28 = vst.msk [vmem:[#allocation2] sm:$0xff] %vm27, %v25
      %29 = vst.msk [vmem:[#allocation2 + $0x8] sm:$0xff] %vm27, %v25
    $region17: #{multi_head_attention.9} parent=1 // pred_fallthru
      _
    %v30 = vld [vmem:[#allocation2] sm:$0xff]
    %v31 = vld [vmem:[#allocation2 + $0x8] sm:$0xff]
    %v32 = vld [vmem:[%s0] sm:$0xff]
    %v33 = vld [vmem:[%s0 + $0x8] sm:$0xff]
    %v34 = vpack.c.bf16 %v33, %v32
    %v35 = vld [vmem:[%s1] sm:$0xff]
    %v36 = vld [vmem:[%s1 + $0x8] sm:$0xff]
    %v37 = vld [vmem:[%s1 + $0x10] sm:$0xff]
    %v38 = vld [vmem:[%s1 + $0x18] sm:$0xff]
    %v39 = vpack.c.bf16 %v36, %v35
    %v40 = vpack.c.bf16 %v38, %v37
    %vm41 = vcmask 261120
    %v43 = vsel %vm41, %v34, 0
    %45 = vmatprep.subr.bf16.mxu0 0
    %46 = vmatpush1.bf16.msra.mxu0 0
    %47 = vmatprep.subr.bf16.mxu0 0
    %48 = vmatpush1.bf16.msra.mxu0 0
    %49 = vmatprep.subr.bf16.mxu0 0
    %50 = vmatpush1.bf16.msra.mxu0 0
    %51 = vmatprep.subr.bf16.mxu0 0
    %52 = vmatpush1.bf16.msra.mxu0 0
    %53 = vmatprep.subr.bf16.mxu0 0
    %54 = vmatpush1.bf16.msra.mxu0 0
    %55 = vmatprep.subr.bf16.mxu0 0
    %56 = vmatpush1.bf16.msra.mxu0 0
    %57 = vmatprep.subr.bf16.mxu0 0
    %58 = vmatpush1.bf16.msra.mxu0 %v40
    %59 = vmatprep.subr.bf16.mxu0 0
    %60 = vmatpush1.bf16.msra.mxu0 %v39
    %61 = vmatprep.subr.bf16.mxu0 0
    %62 = vmatpush2.bf16.msra.mxu0 0
    %63 = vmatprep.subr.bf16.mxu0 0
    %64 = vmatpush2.bf16.msra.mxu0 0
    %65 = vmatprep.subr.bf16.mxu0 0
    %66 = vmatpush2.bf16.msra.mxu0 0
    %67 = vmatprep.subr.bf16.mxu0 0
    %68 = vmatpush2.bf16.msra.mxu0 0
    %69 = vmatprep.subr.bf16.mxu0 0
    %70 = vmatpush2.bf16.msra.mxu0 0
    %71 = vmatprep.subr.bf16.mxu0 0
    %72 = vmatpush2.bf16.msra.mxu0 0
    %73 = vmatprep.subr.bf16.mxu0 0
    %74 = vmatpush2.bf16.msra.mxu0 0
    %75 = vmatprep.subr.bf16.mxu0 0
    %76 = vmatpush2.bf16.msra.mxu0 0
    %77 = vmatprep.mubr.bf16.mxu0 0
    %78 = vmatmul.mubr.bf16.gmra.mxu0 %v43
    %v79 = vpop.f32.mrf.mxu0
    %v80 = vadd.f32 0.0, %v79
    %v81 = vpop.f32.mrf.mxu0
    %v82 = vpop.f32.mrf.mxu0
    %v83 = vadd.f32 0.0, %v82
    %v84 = vpop.f32.mrf.mxu0
    %85 = vdwg.mxu0
    %v86 = vadd.f32 %v30, %v80
    %v87 = vadd.f32 %v31, %v83
    %88 = vst.msk [vmem:[#allocation2] sm:$0xff] %vm41, %v86
    %89 = vst.msk [vmem:[#allocation2 + $0x8] sm:$0xff] %vm41, %v87
    // Predicated region
    $region18: #{multi_head_attention.9} parent=1 // pred_check
      _
    $region19: #{multi_head_attention.9} parent=1 // pred_check_branch
      %91 = sbr.rel (0) target = $region21
    $region20: #{multi_head_attention.9} parent=1 // pred_region
      %s93 = ssub.s32 256, 256
      %94 = vsyncadd [#allocation3], %s93
      %s95 = sshll.u32 [#allocation2], 4
      %s96 = int_to_ptr.vmem [resolvable:$true] %s95
      %101 = dma.vmem_to_hbm [thread:$0]  %s96, 256, %s3, [#allocation3], 128, 128, 8
    $region21: #{multi_head_attention.9} parent=1 // pred_fallthru
      _
    // Predicated region
    $region22: #{multi_head_attention.9} parent=1 // pred_check
      _
    $region23: #{multi_head_attention.9} parent=1 // pred_check_branch
      %103 = sbr.rel (0) target = $region25
    $region24: #{multi_head_attention.9} parent=1 // pred_region
      %104 = dma.done [#allocation3], 256
    $region25: #{multi_head_attention.9} parent=1 // pred_fallthru
      _
    %105 = vsyncpa [#allocation3], 1

// kernel: multi_head_attention.8
$region0: #{multi_head_attention.8}
  #allocation0 [shape = 'u32[]', space=smem, size = 0x4, offset = 0x4, fixed_abs, tag = 'smem constant byte address 0x4 - core index']
  #allocation1 [shape = 'u32[144,128]{1,0:T(1,128)}', space=vmem, size = 0x12000, scoped, tag = 'internal scratch']
  #allocation2 [shape = 'f32[4,8,1]{2,1,0:T(8,128)}', space=vmem, size = 0x4000, scoped, tag = 'scratch operand']
  #allocation3 [shape = 'f32[4,8,1]{2,1,0:T(8,128)}', space=vmem, size = 0x4000, scoped, tag = 'scratch operand']
  #allocation4 [shape = 'f32[4,8,8]{2,1,0:T(8,128)}', space=vmem, size = 0x4000, scoped, tag = 'scratch operand']
  %s0 = inlined_call_operand.vmem [shape: f32[8,8,8], index: 0, kind: input, shape index: {}]
  %s1 = inlined_call_operand.vmem [shape: f32[8,8,8], index: 1, kind: input, shape index: {}]
  %s2 = inlined_call_operand.vmem [shape: f32[8,8,8], index: 2, kind: input, shape index: {}]
  %s3 = inlined_call_operand.vmem [shape: f32[8,8,8], index: 3, kind: output, shape index: {}]
  %s4 = sld [smem:[#allocation0]]
  $region53: #{multi_head_attention.8} parent=0
    _
  %s6 = ssub.s32 1, %s4
  %s7 = scalar_select 0, %s6, %s4
  loop: start=0, step=1, limit=4
  $region2: #{multi_head_attention.8} parent=0 // loop_pre_header
    _
  $region3: #{multi_head_attention.8} parent=0 // loop_header
    %s9 = sphi 0, %s13
    %p10 = scmp.ge.s32.totalorder %s9, 4
    %s16 = sphi 0, %s35
    %s17 = sphi 0, %s31
    %s18 = sphi 0, %s27
    %s19 = sphi 0, %s16
    %s20 = sphi 0, %s17
    %s21 = sphi 0, %s18
    %s22 = sphi 0, %s19
    %s23 = sphi 0, %s20
    %s24 = sphi 0, %s21
    %s40 = sphi 0, %s42
    %s43 = sphi 0, %s40
    %s44 = sphi 0, %s43
    %s60 = sphi 0, %s44
    %s68 = sphi 0, %s70
    %s71 = sphi 0, %s68
    %s72 = sphi 0, %s71
    %s88 = sphi 0, %s72
    %s96 = sphi 0, %s98
    %s99 = sphi 0, %s96
    %s100 = sphi 0, %s99
    %s116 = sphi 0, %s100
    %s124 = sphi 0, %s126
    %s127 = sphi 0, %s124
    %s128 = sphi 0, %s127
    %s144 = sphi 0, %s128
  $region4: #{multi_head_attention.8} parent=0 // loop_header_branch
    %12 = sbr.rel (%p10) target = $region8
  $region5: #{multi_head_attention.8} parent=0 // loop_body
    %s14 = ssub.s32 %s9, 1
    %s15 = ssub.s32 %s9, 2
    %s25 = sadd.s32 1, %s18
    %p26 = scmp.ge.s32.totalorder %s25, 1
    %s27 = scalar_select %p26, 0, %s25
    %s28 = sadd.s32 1, %s17
    %s29 = scalar_select %p26, %s28, %s17
    %p30 = scmp.ge.s32.totalorder %s29, 1
    %s31 = scalar_select %p30, 0, %s29
    %s32 = sadd.s32 1, %s16
    %s33 = scalar_select %p30, %s32, %s16
    %p34 = scmp.ge.s32.totalorder %s33, 2
    %s35 = scalar_select %p34, 0, %s33
    %s36 = ssub.s32 %s16, %s35
    %s37 = ssub.s32 %s17, %s31
    %s38 = sor.u32 %s36, %s37
    %p39 = scmp.eq.s32.totalorder %s38, 0
    %s41 = sadd.s32 %s40, 1
    %s42 = scalar_select %p39, %s40, %s41
    %p45 = pneg %p39
    %p46 = scmp.eq.s32.totalorder %s9, 1
    %p47 = por %p45, %p46
    %p48 = scmp.ne.s32.totalorder %s40, %s43
    %p49 = scmp.eq.s32.totalorder %s9, 0
    %p50 = por %p48, %p49
    %p51 = scmp.ne.s32.totalorder %s40, %s43
    %p52 = scmp.eq.s32.totalorder %s14, 1
    %p53 = por %p51, %p52
    %p54 = scmp.ne.s32.totalorder %s43, %s44
    %p55 = scmp.eq.s32.totalorder %s14, 0
    %p56 = por %p54, %p55
    %p57 = scmp.ne.s32.totalorder %s43, %s44
    %p58 = scmp.eq.s32.totalorder %s15, 1
    %p59 = por %p57, %p58
    %p61 = scmp.ne.s32.totalorder %s44, %s60
    %p62 = scmp.eq.s32.totalorder %s15, 0
    %p63 = por %p61, %p62
    %s64 = ssub.s32 %s16, %s35
    %s65 = ssub.s32 %s18, %s27
    %s66 = sor.u32 %s64, %s65
    %p67 = scmp.eq.s32.totalorder %s66, 0
    %s69 = sadd.s32 %s68, 1
    %s70 = scalar_select %p67, %s68, %s69
    %p73 = pneg %p67
    %p74 = scmp.eq.s32.totalorder %s9, 1
    %p75 = por %p73, %p74
    %p76 = scmp.ne.s32.totalorder %s68, %s71
    %p77 = scmp.eq.s32.totalorder %s9, 0
    %p78 = por %p76, %p77
    %p79 = scmp.ne.s32.totalorder %s68, %s71
    %p80 = scmp.eq.s32.totalorder %s14, 1
    %p81 = por %p79, %p80
    %p82 = scmp.ne.s32.totalorder %s71, %s72
    %p83 = scmp.eq.s32.totalorder %s14, 0
    %p84 = por %p82, %p83
    %p85 = scmp.ne.s32.totalorder %s71, %s72
    %p86 = scmp.eq.s32.totalorder %s15, 1
    %p87 = por %p85, %p86
    %p89 = scmp.ne.s32.totalorder %s72, %s88
    %p90 = scmp.eq.s32.totalorder %s15, 0
    %p91 = por %p89, %p90
    %s92 = ssub.s32 %s16, %s35
    %s93 = ssub.s32 %s18, %s27
    %s94 = sor.u32 %s92, %s93
    %p95 = scmp.eq.s32.totalorder %s94, 0
    %s97 = sadd.s32 %s96, 1
    %s98 = scalar_select %p95, %s96, %s97
    %p101 = pneg %p95
    %p102 = scmp.eq.s32.totalorder %s9, 1
    %p103 = por %p101, %p102
    %p104 = scmp.ne.s32.totalorder %s96, %s99
    %p105 = scmp.eq.s32.totalorder %s9, 0
    %p106 = por %p104, %p105
    %p107 = scmp.ne.s32.totalorder %s96, %s99
    %p108 = scmp.eq.s32.totalorder %s14, 1
    %p109 = por %p107, %p108
    %p110 = scmp.ne.s32.totalorder %s99, %s100
    %p111 = scmp.eq.s32.totalorder %s14, 0
    %p112 = por %p110, %p111
    %p113 = scmp.ne.s32.totalorder %s99, %s100
    %p114 = scmp.eq.s32.totalorder %s15, 1
    %p115 = por %p113, %p114
    %p117 = scmp.ne.s32.totalorder %s100, %s116
    %p118 = scmp.eq.s32.totalorder %s15, 0
    %p119 = por %p117, %p118
    %s120 = ssub.s32 %s16, %s35
    %s121 = ssub.s32 %s17, %s31
    %s122 = sor.u32 %s120, %s121
    %p123 = scmp.eq.s32.totalorder %s122, 0
    %s125 = sadd.s32 %s124, 1
    %s126 = scalar_select %p123, %s124, %s125
    %p129 = pneg %p123
    %p130 = scmp.eq.s32.totalorder %s9, 1
    %p131 = por %p129, %p130
    %p132 = scmp.ne.s32.totalorder %s124, %s127
    %p133 = scmp.eq.s32.totalorder %s9, 0
    %p134 = por %p132, %p133
    %p135 = scmp.ne.s32.totalorder %s124, %s127
    %p136 = scmp.eq.s32.totalorder %s14, 1
    %p137 = por %p135, %p136
    %p138 = scmp.ne.s32.totalorder %s127, %s128
    %p139 = scmp.eq.s32.totalorder %s14, 0
    %p140 = por %p138, %p139
    %p141 = scmp.ne.s32.totalorder %s127, %s128
    %p142 = scmp.eq.s32.totalorder %s15, 1
    %p143 = por %p141, %p142
    %p145 = scmp.ne.s32.totalorder %s128, %s144
    %p146 = scmp.eq.s32.totalorder %s15, 0
    %p147 = por %p145, %p146
    %p148 = scmp.le.s32.totalorder 1, %s9
    %p149 = scmp.lt.s32.totalorder %s9, 3
    %p150 = pnand %p148, %p149
    %p151 = pneg %p150
    // Predicated region
    $region9: #{multi_head_attention.8} parent=5 // pred_check
      _
    $region10: #{multi_head_attention.8} parent=5 // pred_check_branch
      %153 = sbr.rel (%p150) target = $region12
    $region11: #{multi_head_attention.8} parent=5 // pred_region
      %s154 = ssub.s32 %s9, 1
    $region12: #{multi_head_attention.8} parent=5 // pred_fallthru
      _
    %p155 = scmp.lt.s32.totalorder %s9, 2
    // Predicated region
    $region13: #{multi_head_attention.8} parent=5 // pred_check
      %p156 = pneg %p155
    $region14: #{multi_head_attention.8} parent=5 // pred_check_branch
      %158 = sbr.rel (%p156) target = $region16
    $region15: #{multi_head_attention.8} parent=5 // pred_region
      // Predicated region
      $region17: #{multi_head_attention.8} parent=15 // pred_check
        %p159 = pneg %p50
      $region18: #{multi_head_attention.8} parent=15 // pred_check_branch
        %161 = sbr.rel (%p159) target = $region20
      $region19: #{multi_head_attention.8} parent=15 // pred_region
        %s162 = smul.u32 4, %s16
        %p163 = scmp.lt.s32.totalorder %s162, 7
        %s164 = scalar_select %p163, %s162, 7
        %p165 = scmp.lt.s32.totalorder %s17, 0
        %s166 = scalar_select %p165, %s17, 0
        %s167 = sadd.s32 %s166, %s164
        %s168 = smul.addr %s167, 8
        %s169 = scalar_lea.vmem %s0, %s168
        %s170 = smul.u32 4, %s16
      $region20: #{multi_head_attention.8} parent=15 // pred_fallthru
        _
      // Predicated region
      $region21: #{multi_head_attention.8} parent=15 // pred_check
        %p171 = pneg %p78
      $region22: #{multi_head_attention.8} parent=15 // pred_check_branch
        %173 = sbr.rel (%p171) target = $region24
      $region23: #{multi_head_attention.8} parent=15 // pred_region
        %s174 = smul.u32 4, %s16
        %p175 = scmp.lt.s32.totalorder %s174, 7
        %s176 = scalar_select %p175, %s174, 7
        %p177 = scmp.lt.s32.totalorder %s18, 0
        %s178 = scalar_select %p177, %s18, 0
        %s179 = sadd.s32 %s178, %s176
        %s180 = smul.addr %s179, 8
        %s181 = scalar_lea.vmem %s1, %s180
        %s182 = smul.u32 4, %s16
      $region24: #{multi_head_attention.8} parent=15 // pred_fallthru
        _
      // Predicated region
      $region25: #{multi_head_attention.8} parent=15 // pred_check
        %p183 = pneg %p106
      $region26: #{multi_head_attention.8} parent=15 // pred_check_branch
        %185 = sbr.rel (%p183) target = $region28
      $region27: #{multi_head_attention.8} parent=15 // pred_region
        %s186 = smul.u32 4, %s16
        %p187 = scmp.lt.s32.totalorder %s186, 7
        %s188 = scalar_select %p187, %s186, 7
        %p189 = scmp.lt.s32.totalorder %s18, 0
        %s190 = scalar_select %p189, %s18, 0
        %s191 = sadd.s32 %s190, %s188
        %s192 = smul.addr %s191, 8
        %s193 = scalar_lea.vmem %s2, %s192
        %s194 = smul.u32 4, %s16
      $region28: #{multi_head_attention.8} parent=15 // pred_fallthru
        _
    $region16: #{multi_head_attention.8} parent=5 // pred_fallthru
      _
    %p195 = scmp.le.s32.totalorder 1, %s9
    %p196 = scmp.lt.s32.totalorder %s9, 3
    %p197 = pnand %p195, %p196
    %p198 = pneg %p197
    // Predicated region
    $region29: #{multi_head_attention.8} parent=5 // pred_check
      _
    $region30: #{multi_head_attention.8} parent=5 // pred_check_branch
      %200 = sbr.rel (%p197) target = $region32
    $region31: #{multi_head_attention.8} parent=5 // pred_region
      %s201 = ssub.s32 %s9, 1
      %s202 = smul.u32 4, %s19
      %p203 = scmp.lt.s32.totalorder %s202, 7
      %s204 = scalar_select %p203, %s202, 7
      %p205 = scmp.lt.s32.totalorder %s20, 0
      %s206 = scalar_select %p205, %s20, 0
      %s207 = sadd.s32 %s206, %s204
      %s208 = smul.addr %s207, 8
      %s209 = scalar_lea.vmem %s0, %s208
      %p210 = pneg %p56
      %p211 = pneg %p53
      %s212 = smul.u32 4, %s19
      %p213 = scmp.lt.s32.totalorder %s212, 7
      %s214 = scalar_select %p213, %s212, 7
      %p215 = scmp.lt.s32.totalorder %s21, 0
      %s216 = scalar_select %p215, %s21, 0
      %s217 = sadd.s32 %s216, %s214
      %s218 = smul.addr %s217, 8
      %s219 = scalar_lea.vmem %s1, %s218
      %p220 = pneg %p84
      %p221 = pneg %p81
      %s222 = smul.u32 4, %s19
      %p223 = scmp.lt.s32.totalorder %s222, 7
      %s224 = scalar_select %p223, %s222, 7
      %p225 = scmp.lt.s32.totalorder %s21, 0
      %s226 = scalar_select %p225, %s21, 0
      %s227 = sadd.s32 %s226, %s224
      %s228 = smul.addr %s227, 8
      %s229 = scalar_lea.vmem %s2, %s228
      %p230 = pneg %p112
      %p231 = pneg %p109
      %p232 = pneg %p140
      %p233 = pneg %p137
      %s234 = smul.u32 4, %s19
      %p235 = scmp.lt.s32.totalorder %s234, 7
      %s236 = scalar_select %p235, %s234, 7
      %p237 = scmp.lt.s32.totalorder %s20, 0
      %s238 = scalar_select %p237, %s20, 0
      %s239 = sadd.s32 %s238, %s236
      %s240 = smul.addr %s239, 8
      %s241 = scalar_lea.vmem %s3, %s240
      %s242 = smul.u32 4, %s19
      %p243 = scmp.lt.s32.totalorder %s242, 7
      %s244 = scalar_select %p243, %s242, 7
      %p245 = scmp.lt.s32.totalorder %s20, 0
      %s246 = scalar_select %p245, %s20, 0
      %s247 = sadd.s32 %s246, %s244
      %s248 = smul.addr %s247, 8
      %s249 = scalar_lea.vmem %s0, %s248
      %s250 = smul.u32 4, %s19
      %s251 = smul.u32 4, %s19
      %p252 = scmp.lt.s32.totalorder %s251, 7
      %s253 = scalar_select %p252, %s251, 7
      %p254 = scmp.lt.s32.totalorder %s21, 0
      %s255 = scalar_select %p254, %s21, 0
      %s256 = sadd.s32 %s255, %s253
      %s257 = smul.addr %s256, 8
      %s258 = scalar_lea.vmem %s1, %s257
      %s259 = smul.u32 4, %s19
      %s260 = smul.u32 4, %s19
      %p261 = scmp.lt.s32.totalorder %s260, 7
      %s262 = scalar_select %p261, %s260, 7
      %p263 = scmp.lt.s32.totalorder %s21, 0
      %s264 = scalar_select %p263, %s21, 0
      %s265 = sadd.s32 %s264, %s262
      %s266 = smul.addr %s265, 8
      %s267 = scalar_lea.vmem %s2, %s266
      %s268 = smul.u32 4, %s19
      %s269 = smul.u32 4, %s19
      %p270 = scmp.lt.s32.totalorder %s269, 7
      %s271 = scalar_select %p270, %s269, 7
      %p272 = scmp.lt.s32.totalorder %s20, 0
      %s273 = scalar_select %p272, %s20, 0
      %s274 = sadd.s32 %s273, %s271
      %s275 = smul.addr %s274, 8
      %s276 = scalar_lea.vmem %s3, %s275
      %s277 = smul.u32 4, %s19
      %p279 = scmp.eq.s32.totalorder %s21, 0
      // Predicated region
      $region33: #{multi_head_attention.8} parent=31 // pred_check
        %p280 = pneg %p279
      $region34: #{multi_head_attention.8} parent=31 // pred_check_branch
        %282 = sbr.rel (%p280) target = $region36
      $region35: #{multi_head_attention.8} parent=31 // pred_region
        %vm283 = vcmask 7168
        %284 = vst.msk [vmem:[#allocation2] sm:$0xff] %vm283, -inf
        %285 = vst.msk [vmem:[#allocation2 + $0x8] sm:$0xff] %vm283, -inf
        %286 = vst.msk [vmem:[#allocation2 + $0x10] sm:$0xff] %vm283, -inf
        %287 = vst.msk [vmem:[#allocation2 + $0x18] sm:$0xff] %vm283, -inf
        %288 = vst.msk [vmem:[#allocation3] sm:$0xff] %vm283, 0.0
        %289 = vst.msk [vmem:[#allocation3 + $0x8] sm:$0xff] %vm283, 0.0
        %290 = vst.msk [vmem:[#allocation3 + $0x10] sm:$0xff] %vm283, 0.0
        %291 = vst.msk [vmem:[#allocation3 + $0x18] sm:$0xff] %vm283, 0.0
        %vm292 = vcmask 64512
        %293 = vst.msk [vmem:[#allocation4] sm:$0xff] %vm292, 0.0
        %294 = vst.msk [vmem:[#allocation4 + $0x8] sm:$0xff] %vm292, 0.0
        %295 = vst.msk [vmem:[#allocation4 + $0x10] sm:$0xff] %vm292, 0.0
        %296 = vst.msk [vmem:[#allocation4 + $0x18] sm:$0xff] %vm292, 0.0
      $region36: #{multi_head_attention.8} parent=31 // pred_fallthru
        _
      %v297 = vld [vmem:[%s249] sm:$0xff]
      %v298 = vld [vmem:[%s249 + $0x8] sm:$0xff]
      %v299 = vld [vmem:[%s249 + $0x10] sm:$0xff]
      %v300 = vld [vmem:[%s249 + $0x18] sm:$0xff]
      %v301 = vmul.f32 %v297, 0.35355338
      %v302 = vmul.f32 %v298, 0.35355338
      %v303 = vmul.f32 %v299, 0.35355338
      %v304 = vmul.f32 %v300, 0.35355338
      %v305 = vpack.c.bf16 %v301, %v301
      %v306 = vpack.c.bf16 %v302, %v302
      %v307 = vpack.c.bf16 %v303, %v303
      %v308 = vpack.c.bf16 %v304, %v304
      %v309 = vld [vmem:[%s258] sm:$0xff]
      %v310 = vld [vmem:[%s258 + $0x8] sm:$0xff]
      %v311 = vld [vmem:[%s258 + $0x10] sm:$0xff]
      %v312 = vld [vmem:[%s258 + $0x18] sm:$0xff]
      %v313 = vpack.c.bf16 %v309, %v309
      %v314 = vpack.c.bf16 %v310, %v310
      %v315 = vpack.c.bf16 %v311, %v311
      %v316 = vpack.c.bf16 %v312, %v312
      %vm317 = vcmask 64512
      %v319 = vsel %vm317, %v305, 0
      %v322 = vsel %vm317, %v313, 0
      %324 = vmatprep.subr.bf16.mxu0 0
      %325 = vmatpush1.bf16.xpose.msra.mxu0 0
      %326 = vmatprep.subr.bf16.mxu0 0
      %327 = vmatpush1.bf16.xpose.msra.mxu0 0
      %328 = vmatprep.subr.bf16.mxu0 0
      %329 = vmatpush1.bf16.xpose.msra.mxu0 0
      %330 = vmatprep.subr.bf16.mxu0 0
      %331 = vmatpush1.bf16.xpose.msra.mxu0 0
      %332 = vmatprep.subr.bf16.mxu0 0
      %333 = vmatpush1.bf16.xpose.msra.mxu0 0
      %334 = vmatprep.subr.bf16.mxu0 0
      %335 = vmatpush1.bf16.xpose.msra.mxu0 0
      %336 = vmatprep.subr.bf16.mxu0 0
      %337 = vmatpush1.bf16.xpose.msra.mxu0 0
      %338 = vmatprep.subr.bf16.mxu0 0
      %339 = vmatpush1.bf16.xpose.msra.mxu0 %v322
      %340 = vmatprep.subr.bf16.mxu0 0
      %341 = vmatpush2.bf16.xpose.msra.mxu0 0
      %342 = vmatprep.subr.bf16.mxu0 0
      %343 = vmatpush2.bf16.xpose.msra.mxu0 0
      %344 = vmatprep.subr.bf16.mxu0 0
      %345 = vmatpush2.bf16.xpose.msra.mxu0 0
      %346 = vmatprep.subr.bf16.mxu0 0
      %347 = vmatpush2.bf16.xpose.msra.mxu0 0
      %348 = vmatprep.subr.bf16.mxu0 0
      %349 = vmatpush2.bf16.xpose.msra.mxu0 0
      %350 = vmatprep.subr.bf16.mxu0 0
      %351 = vmatpush2.bf16.xpose.msra.mxu0 0
      %352 = vmatprep.subr.bf16.mxu0 0
      %353 = vmatpush2.bf16.xpose.msra.mxu0 0
      %354 = vmatprep.subr.bf16.mxu0 0
      %355 = vmatpush2.bf16.xpose.msra.mxu0 0
      %356 = vmatprep.mubr.bf16.mxu0 0
      %357 = vmatmul.mubr.bf16.gmra.mxu0 %v319
      %v358 = vpop.f32.mrf.mxu0
      %v359 = vadd.f32 0.0, %v358
      %v360 = vpop.f32.mrf.mxu0
      %v361 = vpop.f32.mrf.mxu0
      %v362 = vpop.f32.mrf.mxu0
      %363 = vdwg.mxu0
      %v365 = vsel %vm317, %v306, 0
      %v368 = vsel %vm317, %v314, 0
      %370 = vmatprep.subr.bf16.mxu0 0
      %371 = vmatpush1.bf16.xpose.msra.mxu0 0
      %372 = vmatprep.subr.bf16.mxu0 0
      %373 = vmatpush1.bf16.xpose.msra.mxu0 0
      %374 = vmatprep.subr.bf16.mxu0 0
      %375 = vmatpush1.bf16.xpose.msra.mxu0 0
      %376 = vmatprep.subr.bf16.mxu0 0
      %377 = vmatpush1.bf16.xpose.msra.mxu0 0
      %378 = vmatprep.subr.bf16.mxu0 0
      %379 = vmatpush1.bf16.xpose.msra.mxu0 0
      %380 = vmatprep.subr.bf16.mxu0 0
      %381 = vmatpush1.bf16.xpose.msra.mxu0 0
      %382 = vmatprep.subr.bf16.mxu0 0
      %383 = vmatpush1.bf16.xpose.msra.mxu0 0
      %384 = vmatprep.subr.bf16.mxu0 0
      %385 = vmatpush1.bf16.xpose.msra.mxu0 %v368
      %386 = vmatprep.subr.bf16.mxu0 0
      %387 = vmatpush2.bf16.xpose.msra.mxu0 0
      %388 = vmatprep.subr.bf16.mxu0 0
      %389 = vmatpush2.bf16.xpose.msra.mxu0 0
      %390 = vmatprep.subr.bf16.mxu0 0
      %391 = vmatpush2.bf16.xpose.msra.mxu0 0
      %392 = vmatprep.subr.bf16.mxu0 0
      %393 = vmatpush2.bf16.xpose.msra.mxu0 0
      %394 = vmatprep.subr.bf16.mxu0 0
      %395 = vmatpush2.bf16.xpose.msra.mxu0 0
      %396 = vmatprep.subr.bf16.mxu0 0
      %397 = vmatpush2.bf16.xpose.msra.mxu0 0
      %398 = vmatprep.subr.bf16.mxu0 0
      %399 = vmatpush2.bf16.xpose.msra.mxu0 0
      %400 = vmatprep.subr.bf16.mxu0 0
      %401 = vmatpush2.bf16.xpose.msra.mxu0 0
      %402 = vmatprep.mubr.bf16.mxu0 0
      %403 = vmatmul.mubr.bf16.gmra.mxu0 %v365
      %v404 = vpop.f32.mrf.mxu0
      %v405 = vadd.f32 0.0, %v404
      %v406 = vpop.f32.mrf.mxu0
      %v407 = vpop.f32.mrf.mxu0
      %v408 = vpop.f32.mrf.mxu0
      %409 = vdwg.mxu0
      %v411 = vsel %vm317, %v307, 0
      %v414 = vsel %vm317, %v315, 0
      %416 = vmatprep.subr.bf16.mxu0 0
      %417 = vmatpush1.bf16.xpose.msra.mxu0 0
      %418 = vmatprep.subr.bf16.mxu0 0
      %419 = vmatpush1.bf16.xpose.msra.mxu0 0
      %420 = vmatprep.subr.bf16.mxu0 0
      %421 = vmatpush1.bf16.xpose.msra.mxu0 0
      %422 = vmatprep.subr.bf16.mxu0 0
      %423 = vmatpush1.bf16.xpose.msra.mxu0 0
      %424 = vmatprep.subr.bf16.mxu0 0
      %425 = vmatpush1.bf16.xpose.msra.mxu0 0
      %426 = vmatprep.subr.bf16.mxu0 0
      %427 = vmatpush1.bf16.xpose.msra.mxu0 0
      %428 = vmatprep.subr.bf16.mxu0 0
      %429 = vmatpush1.bf16.xpose.msra.mxu0 0
      %430 = vmatprep.subr.bf16.mxu0 0
      %431 = vmatpush1.bf16.xpose.msra.mxu0 %v414
      %432 = vmatprep.subr.bf16.mxu0 0
      %433 = vmatpush2.bf16.xpose.msra.mxu0 0
      %434 = vmatprep.subr.bf16.mxu0 0
      %435 = vmatpush2.bf16.xpose.msra.mxu0 0
      %436 = vmatprep.subr.bf16.mxu0 0
      %437 = vmatpush2.bf16.xpose.msra.mxu0 0
      %438 = vmatprep.subr.bf16.mxu0 0
      %439 = vmatpush2.bf16.xpose.msra.mxu0 0
      %440 = vmatprep.subr.bf16.mxu0 0
      %441 = vmatpush2.bf16.xpose.msra.mxu0 0
      %442 = vmatprep.subr.bf16.mxu0 0
      %443 = vmatpush2.bf16.xpose.msra.mxu0 0
      %444 = vmatprep.subr.bf16.mxu0 0
      %445 = vmatpush2.bf16.xpose.msra.mxu0 0
      %446 = vmatprep.subr.bf16.mxu0 0
      %447 = vmatpush2.bf16.xpose.msra.mxu0 0
      %448 = vmatprep.mubr.bf16.mxu0 0
      %449 = vmatmul.mubr.bf16.gmra.mxu0 %v411
      %v450 = vpop.f32.mrf.mxu0
      %v451 = vadd.f32 0.0, %v450
      %v452 = vpop.f32.mrf.mxu0
      %v453 = vpop.f32.mrf.mxu0
      %v454 = vpop.f32.mrf.mxu0
      %455 = vdwg.mxu0
      %v457 = vsel %vm317, %v308, 0
      %v460 = vsel %vm317, %v316, 0
      %462 = vmatprep.subr.bf16.mxu0 0
      %463 = vmatpush1.bf16.xpose.msra.mxu0 0
      %464 = vmatprep.subr.bf16.mxu0 0
      %465 = vmatpush1.bf16.xpose.msra.mxu0 0
      %466 = vmatprep.subr.bf16.mxu0 0
      %467 = vmatpush1.bf16.xpose.msra.mxu0 0
      %468 = vmatprep.subr.bf16.mxu0 0
      %469 = vmatpush1.bf16.xpose.msra.mxu0 0
      %470 = vmatprep.subr.bf16.mxu0 0
      %471 = vmatpush1.bf16.xpose.msra.mxu0 0
      %472 = vmatprep.subr.bf16.mxu0 0
      %473 = vmatpush1.bf16.xpose.msra.mxu0 0
      %474 = vmatprep.subr.bf16.mxu0 0
      %475 = vmatpush1.bf16.xpose.msra.mxu0 0
      %476 = vmatprep.subr.bf16.mxu0 0
      %477 = vmatpush1.bf16.xpose.msra.mxu0 %v460
      %478 = vmatprep.subr.bf16.mxu0 0
      %479 = vmatpush2.bf16.xpose.msra.mxu0 0
      %480 = vmatprep.subr.bf16.mxu0 0
      %481 = vmatpush2.bf16.xpose.msra.mxu0 0
      %482 = vmatprep.subr.bf16.mxu0 0
      %483 = vmatpush2.bf16.xpose.msra.mxu0 0
      %484 = vmatprep.subr.bf16.mxu0 0
      %485 = vmatpush2.bf16.xpose.msra.mxu0 0
      %486 = vmatprep.subr.bf16.mxu0 0
      %487 = vmatpush2.bf16.xpose.msra.mxu0 0
      %488 = vmatprep.subr.bf16.mxu0 0
      %489 = vmatpush2.bf16.xpose.msra.mxu0 0
      %490 = vmatprep.subr.bf16.mxu0 0
      %491 = vmatpush2.bf16.xpose.msra.mxu0 0
      %492 = vmatprep.subr.bf16.mxu0 0
      %493 = vmatpush2.bf16.xpose.msra.mxu0 0
      %494 = vmatprep.mubr.bf16.mxu0 0
      %495 = vmatmul.mubr.bf16.gmra.mxu0 %v457
      %v496 = vpop.f32.mrf.mxu0
      %v497 = vadd.f32 0.0, %v496
      %v498 = vpop.f32.mrf.mxu0
      %v499 = vpop.f32.mrf.mxu0
      %v500 = vpop.f32.mrf.mxu0
      %501 = vdwg.mxu0
      %v502 = vld [vmem:[#allocation2] sm:$0xff]
      %v503 = vld [vmem:[#allocation2 + $0x8] sm:$0xff]
      %v504 = vld [vmem:[#allocation2 + $0x10] sm:$0xff]
      %v505 = vld [vmem:[#allocation2 + $0x18] sm:$0xff]
      %v506 = vsel %vm317, %v359, -inf
      %507 = vmax.xlane.f32.xlu0 %v506
      %v508 = vpop.xlane.xlu0 %507
      %v509 = vsel %vm317, %v405, -inf
      %510 = vmax.xlane.f32.xlu0 %v509
      %v511 = vpop.xlane.xlu0 %510
      %v512 = vsel %vm317, %v451, -inf
      %513 = vmax.xlane.f32.xlu0 %v512
      %v514 = vpop.xlane.xlu0 %513
      %v515 = vsel %vm317, %v497, -inf
      %516 = vmax.xlane.f32.xlu0 %v515
      %v517 = vpop.xlane.xlu0 %516
      %v518 = vmax.f32 %v502, %v508
      %v519 = vmax.f32 %v503, %v511
      %v520 = vmax.f32 %v504, %v514
      %v521 = vmax.f32 %v505, %v517
      %v522 = vsub.f32 %v502, %v518
      %v523 = vsub.f32 %v503, %v519
      %v524 = vsub.f32 %v504, %v520
      %v525 = vsub.f32 %v505, %v521
      %v526 = vmul.f32 %v522, 1.442695
      %v527 = vpow.pop %v526
      %v528 = vmul.f32 %v523, 1.442695
      %v529 = vpow.pop %v528
      %v530 = vmul.f32 %v524, 1.442695
      %v531 = vpow.pop %v530
      %v532 = vmul.f32 %v525, 1.442695
      %v533 = vpow.pop %v532
      %535 = vset.pattern.permute.xlu0 0
      %536 = vperm.xlu0 %535, %v518
      %v537 = vpop.permute.xlu0 %536
      %540 = vset.pattern.permute.xlu0 0
      %541 = vperm.xlu0 %540, %v519
      %v542 = vpop.permute.xlu0 %541
      %545 = vset.pattern.permute.xlu0 0
      %546 = vperm.xlu0 %545, %v520
      %v547 = vpop.permute.xlu0 %546
      %550 = vset.pattern.permute.xlu0 0
      %551 = vperm.xlu0 %550, %v521
      %v552 = vpop.permute.xlu0 %551
      %v554 = vsub.f32 %v359, %v537
      %v555 = vsub.f32 %v405, %v542
      %v556 = vsub.f32 %v451, %v547
      %v557 = vsub.f32 %v497, %v552
      %v558 = vmul.f32 %v554, 1.442695
      %v559 = vpow.pop %v558
      %v560 = vmul.f32 %v555, 1.442695
      %v561 = vpow.pop %v560
      %v562 = vmul.f32 %v556, 1.442695
      %v563 = vpow.pop %v562
      %v564 = vmul.f32 %v557, 1.442695
      %v565 = vpow.pop %v564
      %v566 = vld [vmem:[#allocation3] sm:$0xff]
      %v567 = vld [vmem:[#allocation3 + $0x8] sm:$0xff]
      %v568 = vld [vmem:[#allocation3 + $0x10] sm:$0xff]
      %v569 = vld [vmem:[#allocation3 + $0x18] sm:$0xff]
      %v570 = vmul.f32 %v527, %v566
      %v571 = vmul.f32 %v529, %v567
      %v572 = vmul.f32 %v531, %v568
      %v573 = vmul.f32 %v533, %v569
      %v574 = vsel %vm317, %v559, 0.0
      %575 = vadd.xlane.f32.xlu0 %v574
      %v576 = vpop.xlane.xlu0 %575
      %v577 = vsel %vm317, %v561, 0.0
      %578 = vadd.xlane.f32.xlu0 %v577
      %v579 = vpop.xlane.xlu0 %578
      %v580 = vsel %vm317, %v563, 0.0
      %581 = vadd.xlane.f32.xlu0 %v580
      %v582 = vpop.xlane.xlu0 %581
      %v583 = vsel %vm317, %v565, 0.0
      %584 = vadd.xlane.f32.xlu0 %v583
      %v585 = vpop.xlane.xlu0 %584
      %v586 = vadd.f32 %v570, %v576
      %v587 = vadd.f32 %v571, %v579
      %v588 = vadd.f32 %v572, %v582
      %v589 = vadd.f32 %v573, %v585
      %vm590 = vcmask 7168
      %591 = vst.msk [vmem:[#allocation3] sm:$0xff] %vm590, %v586
      %592 = vst.msk [vmem:[#allocation3 + $0x8] sm:$0xff] %vm590, %v587
      %593 = vst.msk [vmem:[#allocation3 + $0x10] sm:$0xff] %vm590, %v588
      %594 = vst.msk [vmem:[#allocation3 + $0x18] sm:$0xff] %vm590, %v589
      %v595 = vld [vmem:[#allocation4] sm:$0xff]
      %v596 = vld [vmem:[#allocation4 + $0x8] sm:$0xff]
      %v597 = vld [vmem:[#allocation4 + $0x10] sm:$0xff]
      %v598 = vld [vmem:[#allocation4 + $0x18] sm:$0xff]
      %600 = vset.pattern.permute.xlu0 0
      %601 = vperm.xlu0 %600, %v527
      %v602 = vpop.permute.xlu0 %601
      %605 = vset.pattern.permute.xlu0 0
      %606 = vperm.xlu0 %605, %v529
      %v607 = vpop.permute.xlu0 %606
      %610 = vset.pattern.permute.xlu0 0
      %611 = vperm.xlu0 %610, %v531
      %v612 = vpop.permute.xlu0 %611
      %615 = vset.pattern.permute.xlu0 0
      %616 = vperm.xlu0 %615, %v533
      %v617 = vpop.permute.xlu0 %616
      %v619 = vmul.f32 %v602, %v595
      %v620 = vmul.f32 %v607, %v596
      %v621 = vmul.f32 %v612, %v597
      %v622 = vmul.f32 %v617, %v598
      %v623 = vpack.c.bf16 %v559, %v559
      %v624 = vpack.c.bf16 %v561, %v561
      %v625 = vpack.c.bf16 %v563, %v563
      %v626 = vpack.c.bf16 %v565, %v565
      %v627 = vld [vmem:[%s267] sm:$0xff]
      %v628 = vld [vmem:[%s267 + $0x8] sm:$0xff]
      %v629 = vld [vmem:[%s267 + $0x10] sm:$0xff]
      %v630 = vld [vmem:[%s267 + $0x18] sm:$0xff]
      %v631 = vpack.c.bf16 %v627, %v627
      %v632 = vpack.c.bf16 %v628, %v628
      %v633 = vpack.c.bf16 %v629, %v629
      %v634 = vpack.c.bf16 %v630, %v630
      %v636 = vsel %vm317, %v623, 0
      %vm638 = vcmask 1043456
      %v640 = vsel %vm638, %v631, 0
      %642 = vmatprep.subr.bf16.mxu0 0
      %643 = vmatpush1.bf16.msra.mxu0 0
      %644 = vmatprep.subr.bf16.mxu0 0
      %645 = vmatpush1.bf16.msra.mxu0 0
      %646 = vmatprep.subr.bf16.mxu0 0
      %647 = vmatpush1.bf16.msra.mxu0 0
      %648 = vmatprep.subr.bf16.mxu0 0
      %649 = vmatpush1.bf16.msra.mxu0 0
      %650 = vmatprep.subr.bf16.mxu0 0
      %651 = vmatpush1.bf16.msra.mxu0 0
      %652 = vmatprep.subr.bf16.mxu0 0
      %653 = vmatpush1.bf16.msra.mxu0 0
      %654 = vmatprep.subr.bf16.mxu0 0
      %655 = vmatpush1.bf16.msra.mxu0 0
      %656 = vmatprep.subr.bf16.mxu0 0
      %657 = vmatpush1.bf16.msra.mxu0 %v640
      %658 = vmatprep.subr.bf16.mxu0 0
      %659 = vmatpush2.bf16.msra.mxu0 0
      %660 = vmatprep.subr.bf16.mxu0 0
      %661 = vmatpush2.bf16.msra.mxu0 0
      %662 = vmatprep.subr.bf16.mxu0 0
      %663 = vmatpush2.bf16.msra.mxu0 0
      %664 = vmatprep.subr.bf16.mxu0 0
      %665 = vmatpush2.bf16.msra.mxu0 0
      %666 = vmatprep.subr.bf16.mxu0 0
      %667 = vmatpush2.bf16.msra.mxu0 0
      %668 = vmatprep.subr.bf16.mxu0 0
      %669 = vmatpush2.bf16.msra.mxu0 0
      %670 = vmatprep.subr.bf16.mxu0 0
      %671 = vmatpush2.bf16.msra.mxu0 0
      %672 = vmatprep.subr.bf16.mxu0 0
      %673 = vmatpush2.bf16.msra.mxu0 0
      %674 = vmatprep.mubr.bf16.mxu0 0
      %675 = vmatmul.mubr.bf16.gmra.mxu0 %v636
      %v676 = vpop.f32.mrf.mxu0
      %v677 = vadd.f32 0.0, %v676
      %v678 = vpop.f32.mrf.mxu0
      %v679 = vpop.f32.mrf.mxu0
      %v680 = vpop.f32.mrf.mxu0
      %681 = vdwg.mxu0
      %v683 = vsel %vm317, %v624, 0
      %v686 = vsel %vm638, %v632, 0
      %688 = vmatprep.subr.bf16.mxu0 0
      %689 = vmatpush1.bf16.msra.mxu0 0
      %690 = vmatprep.subr.bf16.mxu0 0
      %691 = vmatpush1.bf16.msra.mxu0 0
      %692 = vmatprep.subr.bf16.mxu0 0
      %693 = vmatpush1.bf16.msra.mxu0 0
      %694 = vmatprep.subr.bf16.mxu0 0
      %695 = vmatpush1.bf16.msra.mxu0 0
      %696 = vmatprep.subr.bf16.mxu0 0
      %697 = vmatpush1.bf16.msra.mxu0 0
      %698 = vmatprep.subr.bf16.mxu0 0
      %699 = vmatpush1.bf16.msra.mxu0 0
      %700 = vmatprep.subr.bf16.mxu0 0
      %701 = vmatpush1.bf16.msra.mxu0 0
      %702 = vmatprep.subr.bf16.mxu0 0
      %703 = vmatpush1.bf16.msra.mxu0 %v686
      %704 = vmatprep.subr.bf16.mxu0 0
      %705 = vmatpush2.bf16.msra.mxu0 0
      %706 = vmatprep.subr.bf16.mxu0 0
      %707 = vmatpush2.bf16.msra.mxu0 0
      %708 = vmatprep.subr.bf16.mxu0 0
      %709 = vmatpush2.bf16.msra.mxu0 0
      %710 = vmatprep.subr.bf16.mxu0 0
      %711 = vmatpush2.bf16.msra.mxu0 0
      %712 = vmatprep.subr.bf16.mxu0 0
      %713 = vmatpush2.bf16.msra.mxu0 0
      %714 = vmatprep.subr.bf16.mxu0 0
      %715 = vmatpush2.bf16.msra.mxu0 0
      %716 = vmatprep.subr.bf16.mxu0 0
      %717 = vmatpush2.bf16.msra.mxu0 0
      %718 = vmatprep.subr.bf16.mxu0 0
      %719 = vmatpush2.bf16.msra.mxu0 0
      %720 = vmatprep.mubr.bf16.mxu0 0
      %721 = vmatmul.mubr.bf16.gmra.mxu0 %v683
      %v722 = vpop.f32.mrf.mxu0
      %v723 = vadd.f32 0.0, %v722
      %v724 = vpop.f32.mrf.mxu0
      %v725 = vpop.f32.mrf.mxu0
      %v726 = vpop.f32.mrf.mxu0
      %727 = vdwg.mxu0
      %v729 = vsel %vm317, %v625, 0
      %v732 = vsel %vm638, %v633, 0
      %734 = vmatprep.subr.bf16.mxu0 0
      %735 = vmatpush1.bf16.msra.mxu0 0
      %736 = vmatprep.subr.bf16.mxu0 0
      %737 = vmatpush1.bf16.msra.mxu0 0
      %738 = vmatprep.subr.bf16.mxu0 0
      %739 = vmatpush1.bf16.msra.mxu0 0
      %740 = vmatprep.subr.bf16.mxu0 0
      %741 = vmatpush1.bf16.msra.mxu0 0
      %742 = vmatprep.subr.bf16.mxu0 0
      %743 = vmatpush1.bf16.msra.mxu0 0
      %744 = vmatprep.subr.bf16.mxu0 0
      %745 = vmatpush1.bf16.msra.mxu0 0
      %746 = vmatprep.subr.bf16.mxu0 0
      %747 = vmatpush1.bf16.msra.mxu0 0
      %748 = vmatprep.subr.bf16.mxu0 0
      %749 = vmatpush1.bf16.msra.mxu0 %v732
      %750 = vmatprep.subr.bf16.mxu0 0
      %751 = vmatpush2.bf16.msra.mxu0 0
      %752 = vmatprep.subr.bf16.mxu0 0
      %753 = vmatpush2.bf16.msra.mxu0 0
      %754 = vmatprep.subr.bf16.mxu0 0
      %755 = vmatpush2.bf16.msra.mxu0 0
      %756 = vmatprep.subr.bf16.mxu0 0
      %757 = vmatpush2.bf16.msra.mxu0 0
      %758 = vmatprep.subr.bf16.mxu0 0
      %759 = vmatpush2.bf16.msra.mxu0 0
      %760 = vmatprep.subr.bf16.mxu0 0
      %761 = vmatpush2.bf16.msra.mxu0 0
      %762 = vmatprep.subr.bf16.mxu0 0
      %763 = vmatpush2.bf16.msra.mxu0 0
      %764 = vmatprep.subr.bf16.mxu0 0
      %765 = vmatpush2.bf16.msra.mxu0 0
      %766 = vmatprep.mubr.bf16.mxu0 0
      %767 = vmatmul.mubr.bf16.gmra.mxu0 %v729
      %v768 = vpop.f32.mrf.mxu0
      %v769 = vadd.f32 0.0, %v768
      %v770 = vpop.f32.mrf.mxu0
      %v771 = vpop.f32.mrf.mxu0
      %v772 = vpop.f32.mrf.mxu0
      %773 = vdwg.mxu0
      %v775 = vsel %vm317, %v626, 0
      %v778 = vsel %vm638, %v634, 0
      %780 = vmatprep.subr.bf16.mxu0 0
      %781 = vmatpush1.bf16.msra.mxu0 0
      %782 = vmatprep.subr.bf16.mxu0 0
      %783 = vmatpush1.bf16.msra.mxu0 0
      %784 = vmatprep.subr.bf16.mxu0 0
      %785 = vmatpush1.bf16.msra.mxu0 0
      %786 = vmatprep.subr.bf16.mxu0 0
      %787 = vmatpush1.bf16.msra.mxu0 0
      %788 = vmatprep.subr.bf16.mxu0 0
      %789 = vmatpush1.bf16.msra.mxu0 0
      %790 = vmatprep.subr.bf16.mxu0 0
      %791 = vmatpush1.bf16.msra.mxu0 0
      %792 = vmatprep.subr.bf16.mxu0 0
      %793 = vmatpush1.bf16.msra.mxu0 0
      %794 = vmatprep.subr.bf16.mxu0 0
      %795 = vmatpush1.bf16.msra.mxu0 %v778
      %796 = vmatprep.subr.bf16.mxu0 0
      %797 = vmatpush2.bf16.msra.mxu0 0
      %798 = vmatprep.subr.bf16.mxu0 0
      %799 = vmatpush2.bf16.msra.mxu0 0
      %800 = vmatprep.subr.bf16.mxu0 0
      %801 = vmatpush2.bf16.msra.mxu0 0
      %802 = vmatprep.subr.bf16.mxu0 0
      %803 = vmatpush2.bf16.msra.mxu0 0
      %804 = vmatprep.subr.bf16.mxu0 0
      %805 = vmatpush2.bf16.msra.mxu0 0
      %806 = vmatprep.subr.bf16.mxu0 0
      %807 = vmatpush2.bf16.msra.mxu0 0
      %808 = vmatprep.subr.bf16.mxu0 0
      %809 = vmatpush2.bf16.msra.mxu0 0
      %810 = vmatprep.subr.bf16.mxu0 0
      %811 = vmatpush2.bf16.msra.mxu0 0
      %812 = vmatprep.mubr.bf16.mxu0 0
      %813 = vmatmul.mubr.bf16.gmra.mxu0 %v775
      %v814 = vpop.f32.mrf.mxu0
      %v815 = vadd.f32 0.0, %v814
      %v816 = vpop.f32.mrf.mxu0
      %v817 = vpop.f32.mrf.mxu0
      %v818 = vpop.f32.mrf.mxu0
      %819 = vdwg.mxu0
      %v820 = vadd.f32 %v619, %v677
      %v821 = vadd.f32 %v620, %v723
      %v822 = vadd.f32 %v621, %v769
      %v823 = vadd.f32 %v622, %v815
      %824 = vst.msk [vmem:[#allocation4] sm:$0xff] %vm317, %v820
      %825 = vst.msk [vmem:[#allocation4 + $0x8] sm:$0xff] %vm317, %v821
      %826 = vst.msk [vmem:[#allocation4 + $0x10] sm:$0xff] %vm317, %v822
      %827 = vst.msk [vmem:[#allocation4 + $0x18] sm:$0xff] %vm317, %v823
      %828 = vst.msk [vmem:[#allocation2] sm:$0xff] %vm590, %v518
      %829 = vst.msk [vmem:[#allocation2 + $0x8] sm:$0xff] %vm590, %v519
      %830 = vst.msk [vmem:[#allocation2 + $0x10] sm:$0xff] %vm590, %v520
      %831 = vst.msk [vmem:[#allocation2 + $0x18] sm:$0xff] %vm590, %v521
      // Predicated region
      $region37: #{multi_head_attention.8} parent=31 // pred_check
        %p832 = pneg %p279
      $region38: #{multi_head_attention.8} parent=31 // pred_check_branch
        %834 = sbr.rel (%p832) target = $region40
      $region39: #{multi_head_attention.8} parent=31 // pred_region
        %v835 = vld [vmem:[#allocation3] sm:$0xff]
        %v836 = vld [vmem:[#allocation3 + $0x8] sm:$0xff]
        %v837 = vld [vmem:[#allocation3 + $0x10] sm:$0xff]
        %v838 = vld [vmem:[#allocation3 + $0x18] sm:$0xff]
        %v839 = vrcp.pop %v835
        %v840 = vrcp.pop %v836
        %v841 = vrcp.pop %v837
        %v842 = vrcp.pop %v838
        %v843 = vld [vmem:[#allocation4] sm:$0xff]
        %v844 = vld [vmem:[#allocation4 + $0x8] sm:$0xff]
        %v845 = vld [vmem:[#allocation4 + $0x10] sm:$0xff]
        %v846 = vld [vmem:[#allocation4 + $0x18] sm:$0xff]
        %848 = vset.pattern.permute.xlu0 0
        %849 = vperm.xlu0 %848, %v839
        %v850 = vpop.permute.xlu0 %849
        %853 = vset.pattern.permute.xlu0 0
        %854 = vperm.xlu0 %853, %v840
        %v855 = vpop.permute.xlu0 %854
        %858 = vset.pattern.permute.xlu0 0
        %859 = vperm.xlu0 %858, %v841
        %v860 = vpop.permute.xlu0 %859
        %863 = vset.pattern.permute.xlu0 0
        %864 = vperm.xlu0 %863, %v842
        %v865 = vpop.permute.xlu0 %864
        %v867 = vmul.f32 %v843, %v850
        %v868 = vmul.f32 %v844, %v855
        %v869 = vmul.f32 %v845, %v860
        %v870 = vmul.f32 %v846, %v865
        %871 = vst.msk [vmem:[%s276] sm:$0xff] %vm317, %v867
        %872 = vst.msk [vmem:[%s276 + $0x8] sm:$0xff] %vm317, %v868
        %873 = vst.msk [vmem:[%s276 + $0x10] sm:$0xff] %vm317, %v869
        %874 = vst.msk [vmem:[%s276 + $0x18] sm:$0xff] %vm317, %v870
      $region40: #{multi_head_attention.8} parent=31 // pred_fallthru
        _
      %s875 = smul.u32 4, %s19
      %p876 = scmp.lt.s32.totalorder %s875, 7
      %s877 = scalar_select %p876, %s875, 7
      %p878 = scmp.lt.s32.totalorder %s20, 0
      %s879 = scalar_select %p878, %s20, 0
      %s880 = sadd.s32 %s879, %s877
      %s881 = smul.addr %s880, 8
      %s882 = scalar_lea.vmem %s3, %s881
      // Predicated region
      $region41: #{multi_head_attention.8} parent=31 // pred_check
        %p883 = pneg %p137
      $region42: #{multi_head_attention.8} parent=31 // pred_check_branch
        %885 = sbr.rel (%p883) target = $region44
      $region43: #{multi_head_attention.8} parent=31 // pred_region
        %s886 = smul.u32 4, %s19
      $region44: #{multi_head_attention.8} parent=31 // pred_fallthru
        _
    $region32: #{multi_head_attention.8} parent=5 // pred_fallthru
      _
    %p887 = scmp.le.s32.totalorder 2, %s9
    // Predicated region
    $region45: #{multi_head_attention.8} parent=5 // pred_check
      %p888 = pneg %p887
    $region46: #{multi_head_attention.8} parent=5 // pred_check_branch
      %890 = sbr.rel (%p888) target = $region48
    $region47: #{multi_head_attention.8} parent=5 // pred_region
      %s891 = ssub.s32 %s9, 2
      // Predicated region
      $region49: #{multi_head_attention.8} parent=47 // pred_check
        %p892 = pneg %p143
      $region50: #{multi_head_attention.8} parent=47 // pred_check_branch
        %894 = sbr.rel (%p892) target = $region52
      $region51: #{multi_head_attention.8} parent=47 // pred_region
        %s895 = smul.u32 4, %s22
        %p896 = scmp.lt.s32.totalorder %s895, 7
        %s897 = scalar_select %p896, %s895, 7
        %p898 = scmp.lt.s32.totalorder %s23, 0
        %s899 = scalar_select %p898, %s23, 0
        %s900 = sadd.s32 %s899, %s897
        %s901 = smul.addr %s900, 8
        %s902 = scalar_lea.vmem %s3, %s901
      $region52: #{multi_head_attention.8} parent=47 // pred_fallthru
        _
    $region48: #{multi_head_attention.8} parent=5 // pred_fallthru
      _
  $region6: #{multi_head_attention.8} parent=0 // loop_footer
    %s13 = sadd.s32 1, %s9
  $region7: #{multi_head_attention.8} parent=0 // loop_footer_branch
    %8 = sbr.rel target = $region3
  $region8: #{multi_head_attention.8} parent=0 // loop_exit
    _

</llo_original>
